<compile_context>
chip_gen: v5e
topology: v5e:2x2
jax: 0.10.0
libtpu: 0.0.40
codegen_flags: <defaults>
</compile_context>

<pallas_src>
import jax
import jax.numpy as jnp
from jax.experimental import pallas as pl
from jax.experimental.pallas import tpu as pltpu

NUM_CLASSES = 9          # 8 + background
GAMMA = 2                # focal exponent; == 2 -> explicit square in the kernel


def _focal_loss_kernel(bbox_delta_ref, confs_ref, gt_ref, labels_ref,
                       mul_ref, sub_ref, alpha_ref, out_ref):
    labels = labels_ref[...]                          # [B, T] int32 (-1 = padding)
    confs = confs_ref[...].astype(jnp.float32)        # [B, C, T]
    B, C, T = confs.shape

    # ---------------- focal (classification) loss ----------------
    # Softmax pieces: C exps + 1 log + 1 reciprocal per anchor on the EUP.
    m = jnp.max(confs, axis=1, keepdims=True)         # [B, 1, T]
    z = confs - m
    e = jnp.exp(z)
    s = jnp.sum(e, axis=1)                            # [B, T]
    inv_s = 1.0 / s                                   # one reciprocal per anchor
    log_s = jnp.log(s)                                # reused for log-softmax

    # Early class selection: only the label class survives the one-hot mask,
    # so reduce over classes *before* the (1-p)^2 * logp tail.
    cls_iota = jax.lax.broadcasted_iota(jnp.int32, (B, C, T), 1)
    onehot = (cls_iota == labels[:, None, :]).astype(jnp.float32)
    z_lab = jnp.sum(z * onehot, axis=1)               # [B, T]
    e_lab = jnp.sum(e * onehot, axis=1)               # [B, T]
    p_lab = e_lab * inv_s                             # softmax prob of label class
    logp_lab = z_lab - log_s                          # log-softmax of label class

    # alpha lookup from SMEM (9 scalar reads + selects).  Padded anchors
    # (label == -1) match no class -> alpha_lab stays 0 -> contribute nothing.
    alpha_lab = jnp.zeros_like(p_lab)
    for c in range(NUM_CLASSES):
        alpha_lab = jnp.where(labels == c, alpha_ref[c], alpha_lab)

    t = 1.0 - p_lab                                   # gamma == 2 -> square on VALU
    focal_sum = jnp.sum(-alpha_lab * t * t * logp_lab)

    # ---------------- smooth-L1 (regression) loss ----------------
    # target = mul * (f(gt) - sub), f = identity for xy rows, log for wh rows,
    # with mul/sub precomputed from the static anchors in the wrapper.  Runs on
    # the whole [B, 4, T] slab -> no sub-(8,128) sublane slices.
    bd = bbox_delta_ref[...].astype(jnp.float32)      # [B, 4, T]
    gt = gt_ref[...].astype(jnp.float32)              # [B, 4, T]
    row = jax.lax.broadcasted_iota(jnp.int32, bd.shape, 1)
    gt_term = jnp.where(row < 2, gt, jnp.log(jnp.maximum(gt, 1e-12)))
    diff = bd - mul_ref[...] * (gt_term - sub_ref[...])
    adiff = jnp.abs(diff)
    sl1 = jnp.where(adiff < 1.0, 0.5 * diff * diff, adiff - 0.5)   # beta = 1.0

    posf = (labels > 0).astype(jnp.float32)           # [B, T]
    reg_sum = jnp.sum(jnp.sum(sl1, axis=1) * posf)
    npos = jnp.sum(posf)

    # Lane-dense per-block partials: one full (8, 128) unmasked store.
    ridx = jax.lax.broadcasted_iota(jnp.int32, (8, 128), 0)
    blk = jnp.where(ridx == 0, focal_sum,
          jnp.where(ridx == 1, reg_sum,
          jnp.where(ridx == 2, npos, 0.0)))
    out_ref[...] = blk[None].astype(jnp.float32)


def focal_loss_forward(bbox_delta, confs, gt_bbox, gt_labels, anchors,
                       alpha, scale_xy, scale_wh, tile=512):
    """Forward pass of FocalLoss.  `tile` = anchors per grid step (multiple of
    128; sweep 512-2048 — per-block VMEM stays small on every TPU generation)."""
    B, C, NA = confs.shape
    assert C == NUM_CLASSES
    assert tile % 128 == 0

    num_blocks = pl.cdiv(NA, tile)
    na_pad = num_blocks * tile
    pad = na_pad - NA

    # Anchor-derived constants (anchors are a fixed module parameter):
    #   rows 0-1: target = (scale_xy / anc_wh) * (gt_xy - anc_xy)
    #   rows 2-3: target =  scale_wh           * (log(gt_wh) - log(anc_wh))
    anc = anchors.astype(jnp.float32)                              # [1, 4, NA]
    mul = jnp.concatenate([scale_xy / anc[:, 2:, :],
                           jnp.full_like(anc[:, 2:, :], scale_wh)], axis=1)
    sub = jnp.concatenate([anc[:, :2, :],
                           jnp.log(anc[:, 2:, :])], axis=1)

    # Channel-first gt_bbox (glue).
    # TODO(synk): emit gt_bbox channel-first upstream (or transpose in-kernel on
    # the XLU) to avoid this extra HBM round trip of gt_bbox.
    gt_t = jnp.transpose(gt_bbox, (0, 2, 1)).astype(jnp.float32)   # [B, 4, NA]

    labels = gt_labels.astype(jnp.int32)
    bd = bbox_delta

    if pad:
        bd = jnp.pad(bd, ((0, 0), (0, 0), (0, pad)))
        confs = jnp.pad(confs, ((0, 0), (0, 0), (0, pad)))
        gt_t = jnp.pad(gt_t, ((0, 0), (0, 0), (0, pad)), constant_values=1.0)
        labels = jnp.pad(labels, ((0, 0), (0, pad)), constant_values=-1)
        mul = jnp.pad(mul, ((0, 0), (0, 0), (0, pad)))
        sub = jnp.pad(sub, ((0, 0), (0, 0), (0, pad)))

    partials = pl.pallas_call(
        _focal_loss_kernel,
        out_shape=jax.ShapeDtypeStruct((num_blocks, 8, 128), jnp.float32),
        grid_spec=pltpu.PrefetchScalarGridSpec(
            num_scalar_prefetch=0,
            grid=(num_blocks,),
            in_specs=[
                pl.BlockSpec((B, 4, tile), lambda i: (0, 0, i)),    # bbox_delta
                pl.BlockSpec((B, C, tile), lambda i: (0, 0, i)),    # confs
                pl.BlockSpec((B, 4, tile), lambda i: (0, 0, i)),    # gt_bbox (chan-first)
                pl.BlockSpec((B, tile), lambda i: (0, i)),          # labels
                pl.BlockSpec((1, 4, tile), lambda i: (0, 0, i)),    # mul (anchor const)
                pl.BlockSpec((1, 4, tile), lambda i: (0, 0, i)),    # sub (anchor const)
                pl.BlockSpec(memory_space=pltpu.MemorySpace.SMEM),  # alpha [C]
            ],
            out_specs=pl.BlockSpec((1, 8, 128), lambda i: (i, 0, 0)),
        ),
        compiler_params=pltpu.CompilerParams(
            dimension_semantics=("parallel",)),                     # v7x: 2 TCs
    )(bd, confs, gt_t, labels, mul, sub, alpha.astype(jnp.float32))

    focal_sum = jnp.sum(partials[:, 0, 0])
    reg_sum = jnp.sum(partials[:, 1, 0])
    npos = jnp.sum(partials[:, 2, 0])

    # Matches the module semantics: undefined (inf/nan) if a batch has no
    # positive anchors (the PyTorch reference also divides by num_pos directly).
    regression_loss = reg_sum / npos
    classification_loss = focal_sum / npos
    total_loss = regression_loss + classification_loss
    to_log = dict(regression_loss=regression_loss,
                  classification_loss=classification_loss,
                  total_loss=total_loss)
    return total_loss, to_log


def _ref_forward(bbox_delta, confs, gt_bbox, gt_labels, anchors,
                 alpha, scale_xy, scale_wh):
    """Pure-JAX reference of the PyTorch forward (for correctness check)."""
    p = jax.nn.softmax(confs, axis=1)                     # [B, C, NA]
    logp = jax.nn.log_softmax(confs, axis=1)
    onehot = jax.nn.one_hot(gt_labels, NUM_CLASSES, axis=1)
    focal = -alpha[None, :, None] * (1.0 - p) ** 2 * onehot * logp
    focal_sum = jnp.sum(focal)

    gt = jnp.transpose(gt_bbox, (0, 2, 1))                # [B, 4, NA]
    gxy = scale_xy * (gt[:, :2, :] - anchors[:, :2, :]) / anchors[:, 2:, :]
    gwh = scale_wh * jnp.log(gt[:, 2:, :] / anchors[:, 2:, :])
    gt_loc = jnp.concatenate([gxy, gwh], axis=1)
    diff = bbox_delta - gt_loc
    ax = jnp.abs(diff)
    sl1 = jnp.where(ax < 1.0, 0.5 * diff * diff, ax - 0.5)
    mask = (gt_labels > 0)[:, None, :]
    reg_sum = jnp.sum(jnp.where(mask, sl1, 0.0))
    npos = jnp.sum(mask.astype(jnp.float32))              # one entry per anchor
    return reg_sum / npos + focal_sum / npos


if __name__ == "__main__":
    B, C, NA = 2, NUM_CLASSES, 1000   # NA not a multiple of the tile -> exercises padding
    key = jax.random.PRNGKey(0)
    k1, k2, k3, k4, k5 = jax.random.split(key, 5)

    # "anchors" parameter (deterministic synthetic, xywh order, shape [1, 4, NA])
    anc_cxy = jax.random.uniform(k1, (1, 2, NA), jnp.float32, 0.05, 0.95)
    anc_wh = jax.random.uniform(k2, (1, 2, NA), jnp.float32, 0.05, 0.5)
    anchors = jnp.concatenate([anc_cxy, anc_wh], axis=1)
    scale_xy = 1.0 / 0.1   # = 1 / anchors.scale_xy
    scale_wh = 1.0 / 0.2   # = 1 / anchors.scale_wh
    alpha = jnp.array([0.01, 1, 1, 1, 1, 1, 1, 1, 1], dtype=jnp.float32)

    # inputs
    bbox_delta = jax.random.normal(k3, (B, 4, NA), jnp.float32)
    confs = jax.random.normal(k4, (B, C, NA), jnp.float32)
    gt_cxy = jax.random.uniform(k5, (B, NA, 2), jnp.float32, 0.05, 0.95)
    gt_wh = jax.random.uniform(k1, (B, NA, 2), jnp.float32, 0.05, 0.6)
    gt_bbox = jnp.concatenate([gt_cxy, gt_wh], axis=-1)   # [B, NA, 4]
    gt_labels = jax.random.randint(k2, (B, NA), 0, NUM_CLASSES, jnp.int32)
    gt_labels = gt_labels.at[0, 0].set(1)                  # guarantee >= 1 positive

    total_loss, to_log = focal_loss_forward(
        bbox_delta, confs, gt_bbox, gt_labels, anchors, alpha,
        scale_xy, scale_wh, tile=512)
    total_loss = jax.block_until_ready(total_loss)

    ref = _ref_forward(bbox_delta, confs, gt_bbox, gt_labels, anchors,
                       alpha, scale_xy, scale_wh)
    assert jnp.allclose(total_loss, ref, rtol=1e-4, atol=1e-4), (total_loss, ref)

    print("KERNEL_OK")
</pallas_src>

<mosaic_0001>
module attributes {stable_mosaic.version = 11 : i64} {
  func.func @_focal_loss_kernel(%arg0: i32, %arg1: memref<2x4x512xf32, #tpu.memory_space<vmem>>, %arg2: memref<2x9x512xf32, #tpu.memory_space<vmem>>, %arg3: memref<2x4x512xf32, #tpu.memory_space<vmem>>, %arg4: memref<2x512xi32, #tpu.memory_space<vmem>>, %arg5: memref<1x4x512xf32, #tpu.memory_space<vmem>>, %arg6: memref<1x4x512xf32, #tpu.memory_space<vmem>>, %arg7: memref<9xf32, #tpu.memory_space<smem>>, %arg8: memref<1x8x128xf32, #tpu.memory_space<vmem>>) attributes {dimension_semantics = [#tpu.dimension_semantics<parallel>], iteration_bounds = array<i64: 2>, scalar_prefetch = 0 : i64, scratch_operands = 0 : i64, tpu.core_type = #tpu.core_type<tc>, window_params = [{transform_indices = @transform_0, window_bounds = array<i64: 2, 4, 512>}, {transform_indices = @transform_1, window_bounds = array<i64: 2, 9, 512>}, {transform_indices = @transform_2, window_bounds = array<i64: 2, 4, 512>}, {transform_indices = @transform_3, window_bounds = array<i64: 2, 512>}, {transform_indices = @transform_4, window_bounds = array<i64: 1, 4, 512>}, {transform_indices = @transform_5, window_bounds = array<i64: 1, 4, 512>}, {transform_indices = @transform_6, window_bounds = array<i64: 9>}, {transform_indices = @transform_7, window_bounds = array<i64: 1, 8, 128>}]} {
    %c0 = arith.constant 0 : index
    %c0_0 = arith.constant 0 : index
    %0 = vector.load %arg4[%c0, %c0_0] : memref<2x512xi32, #tpu.memory_space<vmem>>, vector<2x512xi32>
    %c0_1 = arith.constant 0 : index
    %c0_2 = arith.constant 0 : index
    %c0_3 = arith.constant 0 : index
    %1 = vector.load %arg2[%c0_1, %c0_2, %c0_3] : memref<2x9x512xf32, #tpu.memory_space<vmem>>, vector<2x9x512xf32>
    %cst = arith.constant dense<0xFF800000> : vector<2x512xf32>
    %2 = vector.multi_reduction <maximumf>, %1, %cst [1] : vector<2x9x512xf32> to vector<2x512xf32>
    %3 = vector.shape_cast %2 : vector<2x512xf32> to vector<2x1x512xf32>
    %4 = vector.broadcast %3 : vector<2x1x512xf32> to vector<2x9x512xf32>
    %5 = arith.subf %1, %4 : vector<2x9x512xf32>
    %6 = math.exp %5 : vector<2x9x512xf32>
    %cst_4 = arith.constant dense<0.000000e+00> : vector<2x512xf32>
    %7 = vector.multi_reduction <add>, %6, %cst_4 [1] : vector<2x9x512xf32> to vector<2x512xf32>
    %cst_5 = arith.constant 1.000000e+00 : f32
    %8 = vector.broadcast %cst_5 : f32 to vector<2x512xf32>
    %9 = arith.divf %8, %7 : vector<2x512xf32>
    %10 = math.log %7 : vector<2x512xf32>
    %11 = tpu.iota {dimensions = array<i32: 1>} : vector<2x9x512xi32>
    %12 = vector.shape_cast %0 : vector<2x512xi32> to vector<2x1x512xi32>
    %13 = vector.broadcast %12 : vector<2x1x512xi32> to vector<2x9x512xi32>
    %14 = arith.cmpi eq, %11, %13 : vector<2x9x512xi32>
    %15 = arith.extui %14 : vector<2x9x512xi1> to vector<2x9x512xi32>
    %16 = arith.sitofp %15 : vector<2x9x512xi32> to vector<2x9x512xf32>
    %17 = arith.mulf %5, %16 : vector<2x9x512xf32>
    %cst_6 = arith.constant dense<0.000000e+00> : vector<2x512xf32>
    %18 = vector.multi_reduction <add>, %17, %cst_6 [1] : vector<2x9x512xf32> to vector<2x512xf32>
    %19 = arith.mulf %6, %16 : vector<2x9x512xf32>
    %cst_7 = arith.constant dense<0.000000e+00> : vector<2x512xf32>
    %20 = vector.multi_reduction <add>, %19, %cst_7 [1] : vector<2x9x512xf32> to vector<2x512xf32>
    %21 = arith.mulf %20, %9 : vector<2x512xf32>
    %22 = arith.subf %18, %10 : vector<2x512xf32>
    %cst_8 = arith.constant 0.000000e+00 : f32
    %23 = vector.broadcast %cst_8 : f32 to vector<2x512xf32>
    %c0_i32 = arith.constant 0 : i32
    %24 = vector.broadcast %c0_i32 : i32 to vector<2x512xi32>
    %25 = arith.cmpi eq, %0, %24 : vector<2x512xi32>
    %c0_9 = arith.constant 0 : index
    %26 = memref.load %arg7[%c0_9] : memref<9xf32, #tpu.memory_space<smem>>
    %27 = vector.broadcast %26 : f32 to vector<2x512xf32>
    %28 = arith.select %25, %27, %23 : vector<2x512xi1>, vector<2x512xf32>
    %c1_i32 = arith.constant 1 : i32
    %29 = vector.broadcast %c1_i32 : i32 to vector<2x512xi32>
    %30 = arith.cmpi eq, %0, %29 : vector<2x512xi32>
    %c1 = arith.constant 1 : index
    %31 = memref.load %arg7[%c1] : memref<9xf32, #tpu.memory_space<smem>>
    %32 = vector.broadcast %31 : f32 to vector<2x512xf32>
    %33 = arith.select %30, %32, %28 : vector<2x512xi1>, vector<2x512xf32>
    %c2_i32 = arith.constant 2 : i32
    %34 = vector.broadcast %c2_i32 : i32 to vector<2x512xi32>
    %35 = arith.cmpi eq, %0, %34 : vector<2x512xi32>
    %c2 = arith.constant 2 : index
    %36 = memref.load %arg7[%c2] : memref<9xf32, #tpu.memory_space<smem>>
    %37 = vector.broadcast %36 : f32 to vector<2x512xf32>
    %38 = arith.select %35, %37, %33 : vector<2x512xi1>, vector<2x512xf32>
    %c3_i32 = arith.constant 3 : i32
    %39 = vector.broadcast %c3_i32 : i32 to vector<2x512xi32>
    %40 = arith.cmpi eq, %0, %39 : vector<2x512xi32>
    %c3 = arith.constant 3 : index
    %41 = memref.load %arg7[%c3] : memref<9xf32, #tpu.memory_space<smem>>
    %42 = vector.broadcast %41 : f32 to vector<2x512xf32>
    %43 = arith.select %40, %42, %38 : vector<2x512xi1>, vector<2x512xf32>
    %c4_i32 = arith.constant 4 : i32
    %44 = vector.broadcast %c4_i32 : i32 to vector<2x512xi32>
    %45 = arith.cmpi eq, %0, %44 : vector<2x512xi32>
    %c4 = arith.constant 4 : index
    %46 = memref.load %arg7[%c4] : memref<9xf32, #tpu.memory_space<smem>>
    %47 = vector.broadcast %46 : f32 to vector<2x512xf32>
    %48 = arith.select %45, %47, %43 : vector<2x512xi1>, vector<2x512xf32>
    %c5_i32 = arith.constant 5 : i32
    %49 = vector.broadcast %c5_i32 : i32 to vector<2x512xi32>
    %50 = arith.cmpi eq, %0, %49 : vector<2x512xi32>
    %c5 = arith.constant 5 : index
    %51 = memref.load %arg7[%c5] : memref<9xf32, #tpu.memory_space<smem>>
    %52 = vector.broadcast %51 : f32 to vector<2x512xf32>
    %53 = arith.select %50, %52, %48 : vector<2x512xi1>, vector<2x512xf32>
    %c6_i32 = arith.constant 6 : i32
    %54 = vector.broadcast %c6_i32 : i32 to vector<2x512xi32>
    %55 = arith.cmpi eq, %0, %54 : vector<2x512xi32>
    %c6 = arith.constant 6 : index
    %56 = memref.load %arg7[%c6] : memref<9xf32, #tpu.memory_space<smem>>
    %57 = vector.broadcast %56 : f32 to vector<2x512xf32>
    %58 = arith.select %55, %57, %53 : vector<2x512xi1>, vector<2x512xf32>
    %c7_i32 = arith.constant 7 : i32
    %59 = vector.broadcast %c7_i32 : i32 to vector<2x512xi32>
    %60 = arith.cmpi eq, %0, %59 : vector<2x512xi32>
    %c7 = arith.constant 7 : index
    %61 = memref.load %arg7[%c7] : memref<9xf32, #tpu.memory_space<smem>>
    %62 = vector.broadcast %61 : f32 to vector<2x512xf32>
    %63 = arith.select %60, %62, %58 : vector<2x512xi1>, vector<2x512xf32>
    %c8_i32 = arith.constant 8 : i32
    %64 = vector.broadcast %c8_i32 : i32 to vector<2x512xi32>
    %65 = arith.cmpi eq, %0, %64 : vector<2x512xi32>
    %c8 = arith.constant 8 : index
    %66 = memref.load %arg7[%c8] : memref<9xf32, #tpu.memory_space<smem>>
    %67 = vector.broadcast %66 : f32 to vector<2x512xf32>
    %68 = arith.select %65, %67, %63 : vector<2x512xi1>, vector<2x512xf32>
    %cst_10 = arith.constant 1.000000e+00 : f32
    %69 = vector.broadcast %cst_10 : f32 to vector<2x512xf32>
    %70 = arith.subf %69, %21 : vector<2x512xf32>
    %cst_11 = arith.constant 0.000000e+00 : f32
    %71 = vector.broadcast %cst_11 : f32 to vector<2x512xf32>
    %72 = arith.subf %71, %68 : vector<2x512xf32>
    %73 = arith.mulf %72, %70 : vector<2x512xf32>
    %74 = arith.mulf %73, %70 : vector<2x512xf32>
    %75 = arith.mulf %74, %22 : vector<2x512xf32>
    %76 = vector.shape_cast %75 : vector<2x512xf32> to vector<1x2x512xf32>
    %cst_12 = arith.constant dense<0.000000e+00> : vector<1xf32>
    %77 = vector.multi_reduction <add>, %76, %cst_12 [1, 2] : vector<1x2x512xf32> to vector<1xf32>
    %78 = vector.shape_cast %77 : vector<1xf32> to vector<1x1x1xf32>
    %79 = vector.extract %78[0, 0, 0] : f32 from vector<1x1x1xf32>
    %c0_13 = arith.constant 0 : index
    %c0_14 = arith.constant 0 : index
    %c0_15 = arith.constant 0 : index
    %80 = vector.load %arg1[%c0_13, %c0_14, %c0_15] : memref<2x4x512xf32, #tpu.memory_space<vmem>>, vector<2x4x512xf32>
    %c0_16 = arith.constant 0 : index
    %c0_17 = arith.constant 0 : index
    %c0_18 = arith.constant 0 : index
    %81 = vector.load %arg3[%c0_16, %c0_17, %c0_18] : memref<2x4x512xf32, #tpu.memory_space<vmem>>, vector<2x4x512xf32>
    %82 = tpu.iota {dimensions = array<i32: 1>} : vector<2x4x512xi32>
    %c2_i32_19 = arith.constant 2 : i32
    %83 = vector.broadcast %c2_i32_19 : i32 to vector<2x4x512xi32>
    %84 = arith.cmpi slt, %82, %83 : vector<2x4x512xi32>
    %cst_20 = arith.constant 9.99999996E-13 : f32
    %85 = vector.broadcast %cst_20 : f32 to vector<2x4x512xf32>
    %86 = arith.maximumf %81, %85 : vector<2x4x512xf32>
    %87 = math.log %86 : vector<2x4x512xf32>
    %88 = arith.select %84, %81, %87 : vector<2x4x512xi1>, vector<2x4x512xf32>
    %c0_21 = arith.constant 0 : index
    %c0_22 = arith.constant 0 : index
    %c0_23 = arith.constant 0 : index
    %89 = vector.load %arg5[%c0_21, %c0_22, %c0_23] : memref<1x4x512xf32, #tpu.memory_space<vmem>>, vector<1x4x512xf32>
    %c0_24 = arith.constant 0 : index
    %c0_25 = arith.constant 0 : index
    %c0_26 = arith.constant 0 : index
    %90 = vector.load %arg6[%c0_24, %c0_25, %c0_26] : memref<1x4x512xf32, #tpu.memory_space<vmem>>, vector<1x4x512xf32>
    %91 = vector.broadcast %90 : vector<1x4x512xf32> to vector<2x4x512xf32>
    %92 = arith.subf %88, %91 : vector<2x4x512xf32>
    %93 = vector.broadcast %89 : vector<1x4x512xf32> to vector<2x4x512xf32>
    %94 = arith.mulf %93, %92 : vector<2x4x512xf32>
    %95 = arith.subf %80, %94 : vector<2x4x512xf32>
    %96 = math.absf %95 : vector<2x4x512xf32>
    %cst_27 = arith.constant 1.000000e+00 : f32
    %97 = vector.broadcast %cst_27 : f32 to vector<2x4x512xf32>
    %98 = arith.cmpf olt, %96, %97 : vector<2x4x512xf32>
    %cst_28 = arith.constant 5.000000e-01 : f32
    %99 = vector.broadcast %cst_28 : f32 to vector<2x4x512xf32>
    %100 = arith.mulf %99, %95 : vector<2x4x512xf32>
    %101 = arith.mulf %100, %95 : vector<2x4x512xf32>
    %cst_29 = arith.constant 5.000000e-01 : f32
    %102 = vector.broadcast %cst_29 : f32 to vector<2x4x512xf32>
    %103 = arith.subf %96, %102 : vector<2x4x512xf32>
    %104 = arith.select %98, %101, %103 : vector<2x4x512xi1>, vector<2x4x512xf32>
    %c0_i32_30 = arith.constant 0 : i32
    %105 = vector.broadcast %c0_i32_30 : i32 to vector<2x512xi32>
    %106 = arith.cmpi sgt, %0, %105 : vector<2x512xi32>
    %107 = arith.extui %106 : vector<2x512xi1> to vector<2x512xi32>
    %108 = arith.sitofp %107 : vector<2x512xi32> to vector<2x512xf32>
    %cst_31 = arith.constant dense<0.000000e+00> : vector<2x512xf32>
    %109 = vector.multi_reduction <add>, %104, %cst_31 [1] : vector<2x4x512xf32> to vector<2x512xf32>
    %110 = arith.mulf %109, %108 : vector<2x512xf32>
    %111 = vector.shape_cast %110 : vector<2x512xf32> to vector<1x2x512xf32>
    %cst_32 = arith.constant dense<0.000000e+00> : vector<1xf32>
    %112 = vector.multi_reduction <add>, %111, %cst_32 [1, 2] : vector<1x2x512xf32> to vector<1xf32>
    %113 = vector.shape_cast %112 : vector<1xf32> to vector<1x1x1xf32>
    %114 = vector.extract %113[0, 0, 0] : f32 from vector<1x1x1xf32>
    %115 = vector.shape_cast %108 : vector<2x512xf32> to vector<1x2x512xf32>
    %cst_33 = arith.constant dense<0.000000e+00> : vector<1xf32>
    %116 = vector.multi_reduction <add>, %115, %cst_33 [1, 2] : vector<1x2x512xf32> to vector<1xf32>
    %117 = vector.shape_cast %116 : vector<1xf32> to vector<1x1x1xf32>
    %118 = vector.extract %117[0, 0, 0] : f32 from vector<1x1x1xf32>
    %119 = tpu.iota {dimensions = array<i32: 0>} : vector<8x128xi32>
    %c0_i32_34 = arith.constant 0 : i32
    %120 = vector.broadcast %c0_i32_34 : i32 to vector<8x128xi32>
    %121 = arith.cmpi eq, %119, %120 : vector<8x128xi32>
    %c1_i32_35 = arith.constant 1 : i32
    %122 = vector.broadcast %c1_i32_35 : i32 to vector<8x128xi32>
    %123 = arith.cmpi eq, %119, %122 : vector<8x128xi32>
    %c2_i32_36 = arith.constant 2 : i32
    %124 = vector.broadcast %c2_i32_36 : i32 to vector<8x128xi32>
    %125 = arith.cmpi eq, %119, %124 : vector<8x128xi32>
    %cst_37 = arith.constant 0.000000e+00 : f32
    %126 = vector.broadcast %118 : f32 to vector<8x128xf32>
    %127 = vector.broadcast %cst_37 : f32 to vector<8x128xf32>
    %128 = arith.select %125, %126, %127 : vector<8x128xi1>, vector<8x128xf32>
    %129 = vector.broadcast %114 : f32 to vector<8x128xf32>
    %130 = arith.select %123, %129, %128 : vector<8x128xi1>, vector<8x128xf32>
    %131 = vector.broadcast %79 : f32 to vector<8x128xf32>
    %132 = arith.select %121, %131, %130 : vector<8x128xi1>, vector<8x128xf32>
    %133 = vector.shape_cast %132 : vector<8x128xf32> to vector<1x8x128xf32>
    %c0_38 = arith.constant 0 : index
    %c0_39 = arith.constant 0 : index
    %c0_40 = arith.constant 0 : index
    %134 = vector.load %arg8[%c0_38, %c0_39, %c0_40] : memref<1x8x128xf32, #tpu.memory_space<vmem>>, vector<1x8x128xf32>
    tpu.vector_store %arg8[%c0_38, %c0_39, %c0_40], %133 {strides = array<i32>} : memref<1x8x128xf32, #tpu.memory_space<vmem>>, vector<1x8x128xf32>,
    return
  }
  func.func @transform_0(%arg0: i32) -> (i32, i32, i32) {
    %c0_i32 = arith.constant 0 : i32
    %c0_i32_0 = arith.constant 0 : i32
    %c0_i32_1 = arith.constant 0 : i32
    return %c0_i32, %c0_i32_0, %arg0 : i32, i32, i32
  }
  func.func @transform_1(%arg0: i32) -> (i32, i32, i32) {
    %c0_i32 = arith.constant 0 : i32
    %c0_i32_0 = arith.constant 0 : i32
    %c0_i32_1 = arith.constant 0 : i32
    return %c0_i32, %c0_i32_0, %arg0 : i32, i32, i32
  }
  func.func @transform_2(%arg0: i32) -> (i32, i32, i32) {
    %c0_i32 = arith.constant 0 : i32
    %c0_i32_0 = arith.constant 0 : i32
    %c0_i32_1 = arith.constant 0 : i32
    return %c0_i32, %c0_i32_0, %arg0 : i32, i32, i32
  }
  func.func @transform_3(%arg0: i32) -> (i32, i32) {
    %c0_i32 = arith.constant 0 : i32
    %c0_i32_0 = arith.constant 0 : i32
    return %c0_i32, %arg0 : i32, i32
  }
  func.func @transform_4(%arg0: i32) -> (i32, i32, i32) {
    %c0_i32 = arith.constant 0 : i32
    %c0_i32_0 = arith.constant 0 : i32
    %c0_i32_1 = arith.constant 0 : i32
    return %c0_i32, %c0_i32_0, %arg0 : i32, i32, i32
  }
  func.func @transform_5(%arg0: i32) -> (i32, i32, i32) {
    %c0_i32 = arith.constant 0 : i32
    %c0_i32_0 = arith.constant 0 : i32
    %c0_i32_1 = arith.constant 0 : i32
    return %c0_i32, %c0_i32_0, %arg0 : i32, i32, i32
  }
  func.func @transform_6(%arg0: i32) -> i32 {
    %c0_i32 = arith.constant 0 : i32
    %c0_i32_0 = arith.constant 0 : i32
    return %c0_i32 : i32
  }
  func.func @transform_7(%arg0: i32) -> (i32, i32, i32) {
    %c0_i32 = arith.constant 0 : i32
    %c0_i32_0 = arith.constant 0 : i32
    %c0_i32_1 = arith.constant 0 : i32
    return %arg0, %c0_i32, %c0_i32_0 : i32, i32, i32
  }
}

</mosaic_0001>

<llo_original>
// kernel: tpu_custom_call.1
$region0: #{tpu_custom_call.1}
  #allocation0 [shape = 'u32[]', space=smem, size = 0x4, offset = 0x4, fixed_abs, tag = 'smem constant byte address 0x4 - core index']
  #allocation1 [shape = 'u32[72,128]{1,0:T(1,128)}', space=vmem, size = 0x9000, scoped, tag = 'internal scratch']
  %s0 = inlined_call_operand.vmem [shape: f32[2,4,1024], index: 0, kind: input, shape index: {}]
  %s1 = inlined_call_operand.vmem [shape: f32[2,9,1024], index: 1, kind: input, shape index: {}]
  %s2 = inlined_call_operand.vmem [shape: f32[2,4,1024], index: 2, kind: input, shape index: {}]
  %s3 = inlined_call_operand.vmem [shape: s32[2,1024], index: 3, kind: input, shape index: {}]
  %s4 = inlined_call_operand.vmem [shape: f32[1,4,1024], index: 4, kind: input, shape index: {}]
  %s5 = inlined_call_operand.vmem [shape: f32[1,4,1024], index: 5, kind: input, shape index: {}]
  %s6 = inlined_call_operand.vmem [shape: f32[9], index: 6, kind: input, shape index: {}]
  %s7 = inlined_call_operand.hbm [shape: f32[2,8,128], index: 7, kind: output, shape index: {}]
  %s8 = sld [smem:[#allocation0]]
  $region134: #{tpu_custom_call.1} parent=0
    _
  %s10 = ssub.s32 1, %s8
  %s11 = scalar_select 0, %s10, %s8
  $region1: #{tpu_custom_call.1} parent=0
    #allocation2 [shape = 'u8[32768]{0}', space=vmem, size = 0x8000, scoped, tag = 'input window, operand 0']
    #allocation3 [shape = 'u8[131072]{0}', space=vmem, size = 0x20000, scoped, tag = 'input window, operand 1']
    #allocation4 [shape = 'u8[32768]{0}', space=vmem, size = 0x8000, scoped, tag = 'input window, operand 2']
    #allocation5 [shape = 'u8[512]{0}', space=smem, size = 0x200, scoped, tag = 'input window, operand 6, single buffered']
    #allocation6 [shape = 's32[2]{0}', space=sflag, size = 0x8, scoped, tag = 'scoped memory for tpu_custom_call.1']
    #allocation7 [shape = 's32[2]{0}', space=sflag, size = 0x8, scoped, tag = 'scoped memory for tpu_custom_call.1']
    #allocation8 [shape = 'u8[8192]{0}', space=vmem, size = 0x2000, scoped, tag = 'output window, operand 0']
    %12 = vsyncpa [#allocation7], 0
    %13 = vsyncpa [#allocation6], 0
    %s14 = scalar_lea.sflag [#allocation6], 1
    %15 = vsyncpa %s14, 0
    loop: start=0, step=1, limit=4
    $region2: #{tpu_custom_call.1} parent=1 // loop_pre_header
      _
    $region3: #{tpu_custom_call.1} parent=1 // loop_header
      %s17 = sphi 0, %s21
      %p18 = scmp.ge.s32.totalorder %s17, 4
      %s27 = sphi 0, %s29
      %s30 = sphi 0, %s27
      %s31 = sphi 0, %s30
      %s47 = sphi 0, %s31
      %s53 = sphi 0, %s55
      %s56 = sphi 0, %s53
      %s57 = sphi 0, %s56
      %s73 = sphi 0, %s57
      %s79 = sphi 0, %s81
      %s82 = sphi 0, %s79
      %s83 = sphi 0, %s82
      %s99 = sphi 0, %s83
      %s105 = sphi 0, %s107
      %s108 = sphi 0, %s105
      %s109 = sphi 0, %s108
      %s125 = sphi 0, %s109
      %s131 = sphi 0, %s133
      %s134 = sphi 0, %s131
      %s135 = sphi 0, %s134
      %s151 = sphi 0, %s135
      %s157 = sphi 0, %s159
      %s160 = sphi 0, %s157
      %s161 = sphi 0, %s160
      %s177 = sphi 0, %s161
      %s181 = sphi 0, %s181
      %s183 = sphi 0, %s181
      %s184 = sphi 0, %s183
      %s198 = sphi 0, %s184
      %s204 = sphi 0, %s206
      %s207 = sphi 0, %s204
      %s208 = sphi 0, %s207
      %s224 = sphi 0, %s208
    $region4: #{tpu_custom_call.1} parent=1 // loop_header_branch
      %20 = sbr.rel (%p18) target = $region8
    $region5: #{tpu_custom_call.1} parent=1 // loop_body
      %s22 = ssub.s32 %s17, 1
      %s23 = ssub.s32 %s17, 2
      %s24 = sadd.s32 %s17, 1
      %s25 = ssub.s32 %s17, %s24
      %p26 = scmp.eq.s32.totalorder %s25, 0
      %s28 = sadd.s32 %s27, 1
      %s29 = scalar_select %p26, %s27, %s28
      %p32 = pneg %p26
      %p33 = scmp.eq.s32.totalorder %s17, 1
      %p34 = por %p32, %p33
      %p35 = scmp.ne.s32.totalorder %s27, %s30
      %p36 = scmp.eq.s32.totalorder %s17, 0
      %p37 = por %p35, %p36
      %p38 = scmp.ne.s32.totalorder %s27, %s30
      %p39 = scmp.eq.s32.totalorder %s22, 1
      %p40 = por %p38, %p39
      %p41 = scmp.ne.s32.totalorder %s30, %s31
      %p42 = scmp.eq.s32.totalorder %s22, 0
      %p43 = por %p41, %p42
      %p44 = scmp.ne.s32.totalorder %s30, %s31
      %p45 = scmp.eq.s32.totalorder %s23, 1
      %p46 = por %p44, %p45
      %p48 = scmp.ne.s32.totalorder %s31, %s47
      %p49 = scmp.eq.s32.totalorder %s23, 0
      %p50 = por %p48, %p49
      %s51 = ssub.s32 %s17, %s24
      %p52 = scmp.eq.s32.totalorder %s51, 0
      %s54 = sadd.s32 %s53, 1
      %s55 = scalar_select %p52, %s53, %s54
      %p58 = pneg %p52
      %p59 = scmp.eq.s32.totalorder %s17, 1
      %p60 = por %p58, %p59
      %p61 = scmp.ne.s32.totalorder %s53, %s56
      %p62 = scmp.eq.s32.totalorder %s17, 0
      %p63 = por %p61, %p62
      %p64 = scmp.ne.s32.totalorder %s53, %s56
      %p65 = scmp.eq.s32.totalorder %s22, 1
      %p66 = por %p64, %p65
      %p67 = scmp.ne.s32.totalorder %s56, %s57
      %p68 = scmp.eq.s32.totalorder %s22, 0
      %p69 = por %p67, %p68
      %p70 = scmp.ne.s32.totalorder %s56, %s57
      %p71 = scmp.eq.s32.totalorder %s23, 1
      %p72 = por %p70, %p71
      %p74 = scmp.ne.s32.totalorder %s57, %s73
      %p75 = scmp.eq.s32.totalorder %s23, 0
      %p76 = por %p74, %p75
      %s77 = ssub.s32 %s17, %s24
      %p78 = scmp.eq.s32.totalorder %s77, 0
      %s80 = sadd.s32 %s79, 1
      %s81 = scalar_select %p78, %s79, %s80
      %p84 = pneg %p78
      %p85 = scmp.eq.s32.totalorder %s17, 1
      %p86 = por %p84, %p85
      %p87 = scmp.ne.s32.totalorder %s79, %s82
      %p88 = scmp.eq.s32.totalorder %s17, 0
      %p89 = por %p87, %p88
      %p90 = scmp.ne.s32.totalorder %s79, %s82
      %p91 = scmp.eq.s32.totalorder %s22, 1
      %p92 = por %p90, %p91
      %p93 = scmp.ne.s32.totalorder %s82, %s83
      %p94 = scmp.eq.s32.totalorder %s22, 0
      %p95 = por %p93, %p94
      %p96 = scmp.ne.s32.totalorder %s82, %s83
      %p97 = scmp.eq.s32.totalorder %s23, 1
      %p98 = por %p96, %p97
      %p100 = scmp.ne.s32.totalorder %s83, %s99
      %p101 = scmp.eq.s32.totalorder %s23, 0
      %p102 = por %p100, %p101
      %s103 = ssub.s32 %s17, %s24
      %p104 = scmp.eq.s32.totalorder %s103, 0
      %s106 = sadd.s32 %s105, 1
      %s107 = scalar_select %p104, %s105, %s106
      %p110 = pneg %p104
      %p111 = scmp.eq.s32.totalorder %s17, 1
      %p112 = por %p110, %p111
      %p113 = scmp.ne.s32.totalorder %s105, %s108
      %p114 = scmp.eq.s32.totalorder %s17, 0
      %p115 = por %p113, %p114
      %p116 = scmp.ne.s32.totalorder %s105, %s108
      %p117 = scmp.eq.s32.totalorder %s22, 1
      %p118 = por %p116, %p117
      %p119 = scmp.ne.s32.totalorder %s108, %s109
      %p120 = scmp.eq.s32.totalorder %s22, 0
      %p121 = por %p119, %p120
      %p122 = scmp.ne.s32.totalorder %s108, %s109
      %p123 = scmp.eq.s32.totalorder %s23, 1
      %p124 = por %p122, %p123
      %p126 = scmp.ne.s32.totalorder %s109, %s125
      %p127 = scmp.eq.s32.totalorder %s23, 0
      %p128 = por %p126, %p127
      %s129 = ssub.s32 %s17, %s24
      %p130 = scmp.eq.s32.totalorder %s129, 0
      %s132 = sadd.s32 %s131, 1
      %s133 = scalar_select %p130, %s131, %s132
      %p136 = pneg %p130
      %p137 = scmp.eq.s32.totalorder %s17, 1
      %p138 = por %p136, %p137
      %p139 = scmp.ne.s32.totalorder %s131, %s134
      %p140 = scmp.eq.s32.totalorder %s17, 0
      %p141 = por %p139, %p140
      %p142 = scmp.ne.s32.totalorder %s131, %s134
      %p143 = scmp.eq.s32.totalorder %s22, 1
      %p144 = por %p142, %p143
      %p145 = scmp.ne.s32.totalorder %s134, %s135
      %p146 = scmp.eq.s32.totalorder %s22, 0
      %p147 = por %p145, %p146
      %p148 = scmp.ne.s32.totalorder %s134, %s135
      %p149 = scmp.eq.s32.totalorder %s23, 1
      %p150 = por %p148, %p149
      %p152 = scmp.ne.s32.totalorder %s135, %s151
      %p153 = scmp.eq.s32.totalorder %s23, 0
      %p154 = por %p152, %p153
      %s155 = ssub.s32 %s17, %s24
      %p156 = scmp.eq.s32.totalorder %s155, 0
      %s158 = sadd.s32 %s157, 1
      %s159 = scalar_select %p156, %s157, %s158
      %p162 = pneg %p156
      %p163 = scmp.eq.s32.totalorder %s17, 1
      %p164 = por %p162, %p163
      %p165 = scmp.ne.s32.totalorder %s157, %s160
      %p166 = scmp.eq.s32.totalorder %s17, 0
      %p167 = por %p165, %p166
      %p168 = scmp.ne.s32.totalorder %s157, %s160
      %p169 = scmp.eq.s32.totalorder %s22, 1
      %p170 = por %p168, %p169
      %p171 = scmp.ne.s32.totalorder %s160, %s161
      %p172 = scmp.eq.s32.totalorder %s22, 0
      %p173 = por %p171, %p172
      %p174 = scmp.ne.s32.totalorder %s160, %s161
      %p175 = scmp.eq.s32.totalorder %s23, 1
      %p176 = por %p174, %p175
      %p178 = scmp.ne.s32.totalorder %s161, %s177
      %p179 = scmp.eq.s32.totalorder %s23, 0
      %p180 = por %p178, %p179
      %s182 = sadd.s32 %s181, 1
      %p185 = scmp.eq.s32.totalorder %s17, 1
      %p186 = scmp.ne.s32.totalorder %s181, %s183
      %p187 = scmp.eq.s32.totalorder %s17, 0
      %p188 = por %p186, %p187
      %p189 = scmp.ne.s32.totalorder %s181, %s183
      %p190 = scmp.eq.s32.totalorder %s22, 1
      %p191 = por %p189, %p190
      %p192 = scmp.ne.s32.totalorder %s183, %s184
      %p193 = scmp.eq.s32.totalorder %s22, 0
      %p194 = por %p192, %p193
      %p195 = scmp.ne.s32.totalorder %s183, %s184
      %p196 = scmp.eq.s32.totalorder %s23, 1
      %p197 = por %p195, %p196
      %p199 = scmp.ne.s32.totalorder %s184, %s198
      %p200 = scmp.eq.s32.totalorder %s23, 0
      %p201 = por %p199, %p200
      %s202 = ssub.s32 %s17, %s24
      %p203 = scmp.eq.s32.totalorder %s202, 0
      %s205 = sadd.s32 %s204, 1
      %s206 = scalar_select %p203, %s204, %s205
      %p209 = pneg %p203
      %p210 = scmp.eq.s32.totalorder %s17, 1
      %p211 = por %p209, %p210
      %p212 = scmp.ne.s32.totalorder %s204, %s207
      %p213 = scmp.eq.s32.totalorder %s17, 0
      %p214 = por %p212, %p213
      %p215 = scmp.ne.s32.totalorder %s204, %s207
      %p216 = scmp.eq.s32.totalorder %s22, 1
      %p217 = por %p215, %p216
      %p218 = scmp.ne.s32.totalorder %s207, %s208
      %p219 = scmp.eq.s32.totalorder %s22, 0
      %p220 = por %p218, %p219
      %p221 = scmp.ne.s32.totalorder %s207, %s208
      %p222 = scmp.eq.s32.totalorder %s23, 1
      %p223 = por %p221, %p222
      %p225 = scmp.ne.s32.totalorder %s208, %s224
      %p226 = scmp.eq.s32.totalorder %s23, 0
      %p227 = por %p225, %p226
      %p228 = scmp.le.s32.totalorder 1, %s17
      %p229 = scmp.lt.s32.totalorder %s17, 3
      %p230 = pnand %p228, %p229
      %p231 = pneg %p230
      // Predicated region
      $region9: #{tpu_custom_call.1} parent=5 // pred_check
        _
      $region10: #{tpu_custom_call.1} parent=5 // pred_check_branch
        %233 = sbr.rel (%p230) target = $region12
      $region11: #{tpu_custom_call.1} parent=5 // pred_region
        %s234 = ssub.s32 %s17, 1
        // Predicated region
        $region13: #{tpu_custom_call.1} parent=11 // pred_check
          %p235 = pneg %p194
        $region14: #{tpu_custom_call.1} parent=11 // pred_check_branch
          %237 = sbr.rel (%p235) target = $region16
        $region15: #{tpu_custom_call.1} parent=11 // pred_region
          %239 = vsyncadd [#allocation7], 0
          %s241 = sshll.u32 %s6, 4
          %s242 = int_to_ptr.vmem [resolvable:$true] %s241
          %244 = dma.vmem_to_smem %s242, 16, [#allocation5], [#allocation7]
        $region16: #{tpu_custom_call.1} parent=11 // pred_fallthru
          _
      $region12: #{tpu_custom_call.1} parent=5 // pred_fallthru
        _
      %p245 = scmp.lt.s32.totalorder %s17, 2
      // Predicated region
      $region17: #{tpu_custom_call.1} parent=5 // pred_check
        %p246 = pneg %p245
      $region18: #{tpu_custom_call.1} parent=5 // pred_check_branch
        %248 = sbr.rel (%p246) target = $region20
      $region19: #{tpu_custom_call.1} parent=5 // pred_region
        // Predicated region
        $region21: #{tpu_custom_call.1} parent=19 // pred_check
          %p249 = pneg %p37
        $region22: #{tpu_custom_call.1} parent=19 // pred_check_branch
          %251 = sbr.rel (%p249) target = $region24
        $region23: #{tpu_custom_call.1} parent=19 // pred_region
          %s252 = sand.u32 %s27, 1
          %s253 = sand.u32 %s27, 1
          %s254 = smul.addr %s253, 32
          %s255 = scalar_lea.vmem [#allocation2], %s254
          %s256 = smul.u32 4, %s17
          %s257 = smul.addr %s256, 4
          %s258 = scalar_lea.vmem %s0, %s257
          // Predicated region
          $region25: #{tpu_custom_call.1} parent=23 // pred_check
            _
          $region26: #{tpu_custom_call.1} parent=23 // pred_check_branch
            %260 = sbr.rel (0) target = $region28
          $region27: #{tpu_custom_call.1} parent=23 // pred_region
            // Predicated region
            $region29: #{tpu_custom_call.1} parent=27 // pred_check
              _
            $region30: #{tpu_custom_call.1} parent=27 // pred_check_branch
              %262 = sbr.rel (0) target = $region32
            $region31: #{tpu_custom_call.1} parent=27 // pred_region
              loop: start=0, step=1, limit=1
              $region33: #{tpu_custom_call.1} parent=31 // loop_pre_header
                _
              $region34: #{tpu_custom_call.1} parent=31 // loop_header
                %s264 = sphi 0, %s268
                %p265 = scmp.ge.s32.totalorder %s264, 1
                %s269 = sphi %s258, %s258
                %s270 = sphi %s255, %s255
              $region35: #{tpu_custom_call.1} parent=31 // loop_header_branch
                %267 = sbr.rel (%p265) target = $region39
              $region36: #{tpu_custom_call.1} parent=31 // loop_body
                %v271 = vld [vmem:[%s269] sm:$0xff]
                %272 = vst [vmem:[%s270] sm:$0xff] %v271
                %v273 = vld [vmem:[%s269 + $0x8] sm:$0xff]
                %274 = vst [vmem:[%s270 + $0x8] sm:$0xff] %v273
                %v275 = vld [vmem:[%s269 + $0x20] sm:$0xff]
                %276 = vst [vmem:[%s270 + $0x10] sm:$0xff] %v275
                %v277 = vld [vmem:[%s269 + $0x28] sm:$0xff]
                %278 = vst [vmem:[%s270 + $0x18] sm:$0xff] %v277
              $region37: #{tpu_custom_call.1} parent=31 // loop_footer
                %s268 = sadd.s32 1, %s264
              $region38: #{tpu_custom_call.1} parent=31 // loop_footer_branch
                %263 = sbr.rel target = $region34
              $region39: #{tpu_custom_call.1} parent=31 // loop_exit
                _
            $region32: #{tpu_custom_call.1} parent=27 // pred_fallthru
              _
            // Predicated region
            $region40: #{tpu_custom_call.1} parent=27 // pred_check
              _
            $region41: #{tpu_custom_call.1} parent=27 // pred_check_branch
              %280 = sbr.rel target = $region43
            $region42: #{tpu_custom_call.1} parent=27 // pred_region
              _
            $region43: #{tpu_custom_call.1} parent=27 // pred_fallthru
              _
          $region28: #{tpu_custom_call.1} parent=23 // pred_fallthru
            _
          %281 = vnop
        $region24: #{tpu_custom_call.1} parent=19 // pred_fallthru
          _
        // Predicated region
        $region44: #{tpu_custom_call.1} parent=19 // pred_check
          %p282 = pneg %p63
        $region45: #{tpu_custom_call.1} parent=19 // pred_check_branch
          %284 = sbr.rel (%p282) target = $region47
        $region46: #{tpu_custom_call.1} parent=19 // pred_region
          %s285 = sand.u32 %s53, 1
          %s286 = sand.u32 %s53, 1
          %s287 = smul.addr %s286, 128
          %s288 = scalar_lea.vmem [#allocation3], %s287
          %s289 = smul.u32 4, %s17
          %s290 = smul.addr %s289, 8
          %s291 = scalar_lea.vmem %s1, %s290
          // Predicated region
          $region48: #{tpu_custom_call.1} parent=46 // pred_check
            _
          $region49: #{tpu_custom_call.1} parent=46 // pred_check_branch
            %293 = sbr.rel (0) target = $region51
          $region50: #{tpu_custom_call.1} parent=46 // pred_region
            // Predicated region
            $region52: #{tpu_custom_call.1} parent=50 // pred_check
              _
            $region53: #{tpu_custom_call.1} parent=50 // pred_check_branch
              %295 = sbr.rel (0) target = $region55
            $region54: #{tpu_custom_call.1} parent=50 // pred_region
              loop: start=0, step=1, limit=1
              $region56: #{tpu_custom_call.1} parent=54 // loop_pre_header
                _
              $region57: #{tpu_custom_call.1} parent=54 // loop_header
                %s297 = sphi 0, %s301
                %p298 = scmp.ge.s32.totalorder %s297, 1
                %s302 = sphi %s291, %s291
                %s303 = sphi %s288, %s288
              $region58: #{tpu_custom_call.1} parent=54 // loop_header_branch
                %300 = sbr.rel (%p298) target = $region62
              $region59: #{tpu_custom_call.1} parent=54 // loop_body
                %v304 = vld [vmem:[%s302] sm:$0xff]
                %305 = vst [vmem:[%s303] sm:$0xff] %v304
                %v306 = vld [vmem:[%s302 + $0x8] sm:$0xff]
                %307 = vst [vmem:[%s303 + $0x8] sm:$0xff] %v306
                %v308 = vld [vmem:[%s302 + $0x10] sm:$0xff]
                %309 = vst [vmem:[%s303 + $0x10] sm:$0xff] %v308
                %v310 = vld [vmem:[%s302 + $0x18] sm:$0xff]
                %311 = vst [vmem:[%s303 + $0x18] sm:$0xff] %v310
                %v312 = vld [vmem:[%s302 + $0x40] sm:$0xff]
                %313 = vst [vmem:[%s303 + $0x20] sm:$0xff] %v312
                %v314 = vld [vmem:[%s302 + $0x48] sm:$0xff]
                %315 = vst [vmem:[%s303 + $0x28] sm:$0xff] %v314
                %v316 = vld [vmem:[%s302 + $0x50] sm:$0xff]
                %317 = vst [vmem:[%s303 + $0x30] sm:$0xff] %v316
                %v318 = vld [vmem:[%s302 + $0x58] sm:$0xff]
                %319 = vst [vmem:[%s303 + $0x38] sm:$0xff] %v318
                %v320 = vld [vmem:[%s302 + $0x80] sm:$0xff]
                %321 = vst [vmem:[%s303 + $0x40] sm:$0xff] %v320
                %v322 = vld [vmem:[%s302 + $0x88] sm:$0xff]
                %323 = vst [vmem:[%s303 + $0x48] sm:$0xff] %v322
                %v324 = vld [vmem:[%s302 + $0x90] sm:$0xff]
                %325 = vst [vmem:[%s303 + $0x50] sm:$0xff] %v324
                %v326 = vld [vmem:[%s302 + $0x98] sm:$0xff]
                %327 = vst [vmem:[%s303 + $0x58] sm:$0xff] %v326
                %v328 = vld [vmem:[%s302 + $0xc0] sm:$0xff]
                %329 = vst [vmem:[%s303 + $0x60] sm:$0xff] %v328
                %v330 = vld [vmem:[%s302 + $0xc8] sm:$0xff]
                %331 = vst [vmem:[%s303 + $0x68] sm:$0xff] %v330
                %v332 = vld [vmem:[%s302 + $0xd0] sm:$0xff]
                %333 = vst [vmem:[%s303 + $0x70] sm:$0xff] %v332
                %v334 = vld [vmem:[%s302 + $0xd8] sm:$0xff]
                %335 = vst [vmem:[%s303 + $0x78] sm:$0xff] %v334
              $region60: #{tpu_custom_call.1} parent=54 // loop_footer
                %s301 = sadd.s32 1, %s297
              $region61: #{tpu_custom_call.1} parent=54 // loop_footer_branch
                %296 = sbr.rel target = $region57
              $region62: #{tpu_custom_call.1} parent=54 // loop_exit
                _
            $region55: #{tpu_custom_call.1} parent=50 // pred_fallthru
              _
            // Predicated region
            $region63: #{tpu_custom_call.1} parent=50 // pred_check
              _
            $region64: #{tpu_custom_call.1} parent=50 // pred_check_branch
              %337 = sbr.rel target = $region66
            $region65: #{tpu_custom_call.1} parent=50 // pred_region
              _
            $region66: #{tpu_custom_call.1} parent=50 // pred_fallthru
              _
          $region51: #{tpu_custom_call.1} parent=46 // pred_fallthru
            _
          %338 = vnop
        $region47: #{tpu_custom_call.1} parent=19 // pred_fallthru
          _
        // Predicated region
        $region67: #{tpu_custom_call.1} parent=19 // pred_check
          %p339 = pneg %p89
        $region68: #{tpu_custom_call.1} parent=19 // pred_check_branch
          %341 = sbr.rel (%p339) target = $region70
        $region69: #{tpu_custom_call.1} parent=19 // pred_region
          %s342 = sand.u32 %s79, 1
          %s343 = sand.u32 %s79, 1
          %s344 = smul.addr %s343, 32
          %s345 = scalar_lea.vmem [#allocation4], %s344
          %s346 = smul.u32 4, %s17
          %s347 = smul.addr %s346, 4
          %s348 = scalar_lea.vmem %s2, %s347
          // Predicated region
          $region71: #{tpu_custom_call.1} parent=69 // pred_check
            _
          $region72: #{tpu_custom_call.1} parent=69 // pred_check_branch
            %350 = sbr.rel (0) target = $region74
          $region73: #{tpu_custom_call.1} parent=69 // pred_region
            // Predicated region
            $region75: #{tpu_custom_call.1} parent=73 // pred_check
              _
            $region76: #{tpu_custom_call.1} parent=73 // pred_check_branch
              %352 = sbr.rel (0) target = $region78
            $region77: #{tpu_custom_call.1} parent=73 // pred_region
              loop: start=0, step=1, limit=1
              $region79: #{tpu_custom_call.1} parent=77 // loop_pre_header
                _
              $region80: #{tpu_custom_call.1} parent=77 // loop_header
                %s354 = sphi 0, %s358
                %p355 = scmp.ge.s32.totalorder %s354, 1
                %s359 = sphi %s348, %s348
                %s360 = sphi %s345, %s345
              $region81: #{tpu_custom_call.1} parent=77 // loop_header_branch
                %357 = sbr.rel (%p355) target = $region85
              $region82: #{tpu_custom_call.1} parent=77 // loop_body
                %v361 = vld [vmem:[%s359] sm:$0xff]
                %362 = vst [vmem:[%s360] sm:$0xff] %v361
                %v363 = vld [vmem:[%s359 + $0x8] sm:$0xff]
                %364 = vst [vmem:[%s360 + $0x8] sm:$0xff] %v363
                %v365 = vld [vmem:[%s359 + $0x20] sm:$0xff]
                %366 = vst [vmem:[%s360 + $0x10] sm:$0xff] %v365
                %v367 = vld [vmem:[%s359 + $0x28] sm:$0xff]
                %368 = vst [vmem:[%s360 + $0x18] sm:$0xff] %v367
              $region83: #{tpu_custom_call.1} parent=77 // loop_footer
                %s358 = sadd.s32 1, %s354
              $region84: #{tpu_custom_call.1} parent=77 // loop_footer_branch
                %353 = sbr.rel target = $region80
              $region85: #{tpu_custom_call.1} parent=77 // loop_exit
                _
            $region78: #{tpu_custom_call.1} parent=73 // pred_fallthru
              _
            // Predicated region
            $region86: #{tpu_custom_call.1} parent=73 // pred_check
              _
            $region87: #{tpu_custom_call.1} parent=73 // pred_check_branch
              %370 = sbr.rel target = $region89
            $region88: #{tpu_custom_call.1} parent=73 // pred_region
              _
            $region89: #{tpu_custom_call.1} parent=73 // pred_fallthru
              _
          $region74: #{tpu_custom_call.1} parent=69 // pred_fallthru
            _
          %371 = vnop
        $region70: #{tpu_custom_call.1} parent=19 // pred_fallthru
          _
        // Predicated region
        $region90: #{tpu_custom_call.1} parent=19 // pred_check
          %p372 = pneg %p115
        $region91: #{tpu_custom_call.1} parent=19 // pred_check_branch
          %374 = sbr.rel (%p372) target = $region93
        $region92: #{tpu_custom_call.1} parent=19 // pred_region
          %s375 = smul.u32 4, %s17
          %p376 = scmp.lt.s32.totalorder %s375, 7
          %s377 = scalar_select %p376, %s375, 7
          %s378 = smul.addr %s377, 2
          %s379 = scalar_lea.vmem %s3, %s378
          %s380 = smul.u32 4, %s17
        $region93: #{tpu_custom_call.1} parent=19 // pred_fallthru
          _
        // Predicated region
        $region94: #{tpu_custom_call.1} parent=19 // pred_check
          %p381 = pneg %p141
        $region95: #{tpu_custom_call.1} parent=19 // pred_check_branch
          %383 = sbr.rel (%p381) target = $region97
        $region96: #{tpu_custom_call.1} parent=19 // pred_region
          %s384 = smul.u32 4, %s17
          %p385 = scmp.lt.s32.totalorder %s384, 7
          %s386 = scalar_select %p385, %s384, 7
          %s387 = smul.addr %s386, 4
          %s388 = scalar_lea.vmem %s4, %s387
          %s389 = smul.u32 4, %s17
        $region97: #{tpu_custom_call.1} parent=19 // pred_fallthru
          _
        // Predicated region
        $region98: #{tpu_custom_call.1} parent=19 // pred_check
          %p390 = pneg %p167
        $region99: #{tpu_custom_call.1} parent=19 // pred_check_branch
          %392 = sbr.rel (%p390) target = $region101
        $region100: #{tpu_custom_call.1} parent=19 // pred_region
          %s393 = smul.u32 4, %s17
          %p394 = scmp.lt.s32.totalorder %s393, 7
          %s395 = scalar_select %p394, %s393, 7
          %s396 = smul.addr %s395, 4
          %s397 = scalar_lea.vmem %s5, %s396
          %s398 = smul.u32 4, %s17
        $region101: #{tpu_custom_call.1} parent=19 // pred_fallthru
          _
      $region20: #{tpu_custom_call.1} parent=5 // pred_fallthru
        _
      %p399 = scmp.le.s32.totalorder 1, %s17
      %p400 = scmp.lt.s32.totalorder %s17, 3
      %p401 = pnand %p399, %p400
      %p402 = pneg %p401
      // Predicated region
      $region102: #{tpu_custom_call.1} parent=5 // pred_check
        _
      $region103: #{tpu_custom_call.1} parent=5 // pred_check_branch
        %404 = sbr.rel (%p401) target = $region105
      $region104: #{tpu_custom_call.1} parent=5 // pred_region
        %s405 = ssub.s32 %s17, 1
        %s406 = sand.u32 %s30, 1
        %s407 = sand.u32 %s30, 1
        %s408 = smul.addr %s407, 32
        %s409 = scalar_lea.vmem [#allocation2], %s408
        // Predicated region
        $region106: #{tpu_custom_call.1} parent=104 // pred_check
          %p410 = pneg %p43
        $region107: #{tpu_custom_call.1} parent=104 // pred_check_branch
          %412 = sbr.rel (%p410) target = $region109
        $region108: #{tpu_custom_call.1} parent=104 // pred_region
          _
        $region109: #{tpu_custom_call.1} parent=104 // pred_fallthru
          _
        %s413 = sand.u32 %s56, 1
        %s414 = sand.u32 %s56, 1
        %s415 = smul.addr %s414, 128
        %s416 = scalar_lea.vmem [#allocation3], %s415
        // Predicated region
        $region110: #{tpu_custom_call.1} parent=104 // pred_check
          %p417 = pneg %p69
        $region111: #{tpu_custom_call.1} parent=104 // pred_check_branch
          %419 = sbr.rel (%p417) target = $region113
        $region112: #{tpu_custom_call.1} parent=104 // pred_region
          _
        $region113: #{tpu_custom_call.1} parent=104 // pred_fallthru
          _
        %s420 = sand.u32 %s82, 1
        %s421 = sand.u32 %s82, 1
        %s422 = smul.addr %s421, 32
        %s423 = scalar_lea.vmem [#allocation4], %s422
        // Predicated region
        $region114: #{tpu_custom_call.1} parent=104 // pred_check
          %p424 = pneg %p95
        $region115: #{tpu_custom_call.1} parent=104 // pred_check_branch
          %426 = sbr.rel (%p424) target = $region117
        $region116: #{tpu_custom_call.1} parent=104 // pred_region
          _
        $region117: #{tpu_custom_call.1} parent=104 // pred_fallthru
          _
        // Predicated region
        $region118: #{tpu_custom_call.1} parent=104 // pred_check
          %p427 = pneg %p194
        $region119: #{tpu_custom_call.1} parent=104 // pred_check_branch
          %429 = sbr.rel (%p427) target = $region121
        $region120: #{tpu_custom_call.1} parent=104 // pred_region
          %431 = dma.done [#allocation7], 16
        $region121: #{tpu_custom_call.1} parent=104 // pred_fallthru
          _
        %432 = sfence
        %s433 = sand.u32 %s30, 1
        %s434 = sand.u32 %s30, 1
        %s435 = smul.addr %s434, 32
        %s436 = scalar_lea.vmem [#allocation2], %s435
        %p437 = pneg %p43
        %p438 = pneg %p40
        %s439 = sand.u32 %s56, 1
        %s440 = sand.u32 %s56, 1
        %s441 = smul.addr %s440, 128
        %s442 = scalar_lea.vmem [#allocation3], %s441
        %p443 = pneg %p69
        %p444 = pneg %p66
        %s445 = sand.u32 %s82, 1
        %s446 = sand.u32 %s82, 1
        %s447 = smul.addr %s446, 32
        %s448 = scalar_lea.vmem [#allocation4], %s447
        %p449 = pneg %p95
        %p450 = pneg %p92
        %s451 = smul.u32 4, %s22
        %p452 = scmp.lt.s32.totalorder %s451, 7
        %s453 = scalar_select %p452, %s451, 7
        %s454 = smul.addr %s453, 2
        %s455 = scalar_lea.vmem %s3, %s454
        %p456 = pneg %p121
        %p457 = pneg %p118
        %s458 = smul.u32 4, %s22
        %p459 = scmp.lt.s32.totalorder %s458, 7
        %s460 = scalar_select %p459, %s458, 7
        %s461 = smul.addr %s460, 4
        %s462 = scalar_lea.vmem %s4, %s461
        %p463 = pneg %p147
        %p464 = pneg %p144
        %s465 = smul.u32 4, %s22
        %p466 = scmp.lt.s32.totalorder %s465, 7
        %s467 = scalar_select %p466, %s465, 7
        %s468 = smul.addr %s467, 4
        %s469 = scalar_lea.vmem %s5, %s468
        %p470 = pneg %p173
        %p471 = pneg %p170
        %p472 = pneg %p194
        %p473 = pneg %p191
        %p474 = pneg %p220
        %p475 = pneg %p217
        %s476 = sand.u32 %s207, 1
        %s477 = scalar_lea.sflag [#allocation6], %s476
        %s478 = sand.u32 %s207, 1
        %s479 = smul.addr %s478, 8
        %s480 = scalar_lea.vmem [#allocation8], %s479
        %s481 = smul.u32 4, %s22
        %s482 = smul.u32 4, %s22
        %s483 = smul.u32 4, %s22
        %s484 = smul.u32 4, %s22
        %p485 = scmp.lt.s32.totalorder %s484, 7
        %s486 = scalar_select %p485, %s484, 7
        %s487 = smul.addr %s486, 2
        %s488 = scalar_lea.vmem %s3, %s487
        %s489 = smul.u32 4, %s22
        %s490 = smul.u32 4, %s22
        %p491 = scmp.lt.s32.totalorder %s490, 7
        %s492 = scalar_select %p491, %s490, 7
        %s493 = smul.addr %s492, 4
        %s494 = scalar_lea.vmem %s4, %s493
        %s495 = smul.u32 4, %s22
        %s496 = smul.u32 4, %s22
        %p497 = scmp.lt.s32.totalorder %s496, 7
        %s498 = scalar_select %p497, %s496, 7
        %s499 = smul.addr %s498, 4
        %s500 = scalar_lea.vmem %s5, %s499
        %s501 = smul.u32 4, %s22
        %v502 = vld [vmem:[%s488] sm:$0xff]
        %v503 = vld [vmem:[%s416] sm:$0xff]
        %v504 = vld [vmem:[%s416 + $0x8] sm:$0xff]
        %v505 = vld [vmem:[%s416 + $0x10] sm:$0xff]
        %v506 = vld [vmem:[%s416 + $0x18] sm:$0xff]
        %v507 = vld [vmem:[%s416 + $0x20] sm:$0x1]
        %v508 = vld [vmem:[%s416 + $0x28] sm:$0x1]
        %v509 = vld [vmem:[%s416 + $0x30] sm:$0x1]
        %v510 = vld [vmem:[%s416 + $0x38] sm:$0x1]
        %v511 = vld [vmem:[%s416 + $0x40] sm:$0xff]
        %v512 = vld [vmem:[%s416 + $0x48] sm:$0xff]
        %v513 = vld [vmem:[%s416 + $0x50] sm:$0xff]
        %v514 = vld [vmem:[%s416 + $0x58] sm:$0xff]
        %v515 = vld [vmem:[%s416 + $0x60] sm:$0x1]
        %v516 = vld [vmem:[%s416 + $0x68] sm:$0x1]
        %v517 = vld [vmem:[%s416 + $0x70] sm:$0x1]
        %v518 = vld [vmem:[%s416 + $0x78] sm:$0x1]
        %vm519 = vcmask 1040384
        %v520 = vsel %vm519, %v507, -inf
        %v521 = vmax.f32 %v503, %v520
        %v522 = vrot.slane %v521, 4
        %v523 = vmax.f32 %v521, %v522
        %v524 = vrot.slane %v523, 2
        %v525 = vmax.f32 %v523, %v524
        %v526 = vrot.slane %v525, 1
        %v527 = vmax.f32 %v525, %v526
        %v528 = vsel %vm519, %v508, -inf
        %v529 = vmax.f32 %v504, %v528
        %v530 = vrot.slane %v529, 4
        %v531 = vmax.f32 %v529, %v530
        %v532 = vrot.slane %v531, 2
        %v533 = vmax.f32 %v531, %v532
        %v534 = vrot.slane %v533, 1
        %v535 = vmax.f32 %v533, %v534
        %v536 = vsel %vm519, %v509, -inf
        %v537 = vmax.f32 %v505, %v536
        %v538 = vrot.slane %v537, 4
        %v539 = vmax.f32 %v537, %v538
        %v540 = vrot.slane %v539, 2
        %v541 = vmax.f32 %v539, %v540
        %v542 = vrot.slane %v541, 1
        %v543 = vmax.f32 %v541, %v542
        %v544 = vsel %vm519, %v510, -inf
        %v545 = vmax.f32 %v506, %v544
        %v546 = vrot.slane %v545, 4
        %v547 = vmax.f32 %v545, %v546
        %v548 = vrot.slane %v547, 2
        %v549 = vmax.f32 %v547, %v548
        %v550 = vrot.slane %v549, 1
        %v551 = vmax.f32 %v549, %v550
        %v552 = vsel %vm519, %v515, -inf
        %v553 = vmax.f32 %v511, %v552
        %v554 = vrot.slane %v553, 4
        %v555 = vmax.f32 %v553, %v554
        %v556 = vrot.slane %v555, 2
        %v557 = vmax.f32 %v555, %v556
        %v558 = vrot.slane %v557, 1
        %v559 = vmax.f32 %v557, %v558
        %v560 = vsel %vm519, %v516, -inf
        %v561 = vmax.f32 %v512, %v560
        %v562 = vrot.slane %v561, 4
        %v563 = vmax.f32 %v561, %v562
        %v564 = vrot.slane %v563, 2
        %v565 = vmax.f32 %v563, %v564
        %v566 = vrot.slane %v565, 1
        %v567 = vmax.f32 %v565, %v566
        %v568 = vsel %vm519, %v517, -inf
        %v569 = vmax.f32 %v513, %v568
        %v570 = vrot.slane %v569, 4
        %v571 = vmax.f32 %v569, %v570
        %v572 = vrot.slane %v571, 2
        %v573 = vmax.f32 %v571, %v572
        %v574 = vrot.slane %v573, 1
        %v575 = vmax.f32 %v573, %v574
        %v576 = vsel %vm519, %v518, -inf
        %v577 = vmax.f32 %v514, %v576
        %v578 = vrot.slane %v577, 4
        %v579 = vmax.f32 %v577, %v578
        %v580 = vrot.slane %v579, 2
        %v581 = vmax.f32 %v579, %v580
        %v582 = vrot.slane %v581, 1
        %v583 = vmax.f32 %v581, %v582
        %v584 = vsub.f32 %v503, %v527
        %v585 = vsub.f32 %v504, %v535
        %v586 = vsub.f32 %v505, %v543
        %v587 = vsub.f32 %v506, %v551
        %v588 = vsub.f32 %v507, %v527
        %v589 = vsub.f32 %v508, %v535
        %v590 = vsub.f32 %v509, %v543
        %v591 = vsub.f32 %v510, %v551
        %v592 = vsub.f32 %v511, %v559
        %v593 = vsub.f32 %v512, %v567
        %v594 = vsub.f32 %v513, %v575
        %v595 = vsub.f32 %v514, %v583
        %v596 = vsub.f32 %v515, %v559
        %v597 = vsub.f32 %v516, %v567
        %v598 = vsub.f32 %v517, %v575
        %v599 = vsub.f32 %v518, %v583
        %v600 = vmul.f32 %v584, 1.442695
        %v601 = vpow.pop %v600
        %v602 = vmul.f32 %v585, 1.442695
        %v603 = vpow.pop %v602
        %v604 = vmul.f32 %v586, 1.442695
        %v605 = vpow.pop %v604
        %v606 = vmul.f32 %v587, 1.442695
        %v607 = vpow.pop %v606
        %v608 = vmul.f32 %v588, 1.442695
        %v609 = vpow.pop %v608
        %v610 = vmul.f32 %v589, 1.442695
        %v611 = vpow.pop %v610
        %v612 = vmul.f32 %v590, 1.442695
        %v613 = vpow.pop %v612
        %v614 = vmul.f32 %v591, 1.442695
        %v615 = vpow.pop %v614
        %v616 = vmul.f32 %v592, 1.442695
        %v617 = vpow.pop %v616
        %v618 = vmul.f32 %v593, 1.442695
        %v619 = vpow.pop %v618
        %v620 = vmul.f32 %v594, 1.442695
        %v621 = vpow.pop %v620
        %v622 = vmul.f32 %v595, 1.442695
        %v623 = vpow.pop %v622
        %v624 = vmul.f32 %v596, 1.442695
        %v625 = vpow.pop %v624
        %v626 = vmul.f32 %v597, 1.442695
        %v627 = vpow.pop %v626
        %v628 = vmul.f32 %v598, 1.442695
        %v629 = vpow.pop %v628
        %v630 = vmul.f32 %v599, 1.442695
        %v631 = vpow.pop %v630
        %v632 = vsel %vm519, %v609, 0.0
        %v633 = vadd.f32 %v601, %v632
        %v634 = vrot.slane %v633, 4
        %v635 = vadd.f32 %v633, %v634
        %v636 = vrot.slane %v635, 2
        %v637 = vadd.f32 %v635, %v636
        %v638 = vrot.slane %v637, 1
        %v639 = vadd.f32 %v637, %v638
        %v640 = vsel %vm519, %v611, 0.0
        %v641 = vadd.f32 %v603, %v640
        %v642 = vrot.slane %v641, 4
        %v643 = vadd.f32 %v641, %v642
        %v644 = vrot.slane %v643, 2
        %v645 = vadd.f32 %v643, %v644
        %v646 = vrot.slane %v645, 1
        %v647 = vadd.f32 %v645, %v646
        %v648 = vsel %vm519, %v613, 0.0
        %v649 = vadd.f32 %v605, %v648
        %v650 = vrot.slane %v649, 4
        %v651 = vadd.f32 %v649, %v650
        %v652 = vrot.slane %v651, 2
        %v653 = vadd.f32 %v651, %v652
        %v654 = vrot.slane %v653, 1
        %v655 = vadd.f32 %v653, %v654
        %v656 = vsel %vm519, %v615, 0.0
        %v657 = vadd.f32 %v607, %v656
        %v658 = vrot.slane %v657, 4
        %v659 = vadd.f32 %v657, %v658
        %v660 = vrot.slane %v659, 2
        %v661 = vadd.f32 %v659, %v660
        %v662 = vrot.slane %v661, 1
        %v663 = vadd.f32 %v661, %v662
        %v664 = vsel %vm519, %v625, 0.0
        %v665 = vadd.f32 %v617, %v664
        %v666 = vrot.slane %v665, 4
        %v667 = vadd.f32 %v665, %v666
        %v668 = vrot.slane %v667, 2
        %v669 = vadd.f32 %v667, %v668
        %v670 = vrot.slane %v669, 1
        %v671 = vadd.f32 %v669, %v670
        %v672 = vsel %vm519, %v627, 0.0
        %v673 = vadd.f32 %v619, %v672
        %v674 = vrot.slane %v673, 4
        %v675 = vadd.f32 %v673, %v674
        %v676 = vrot.slane %v675, 2
        %v677 = vadd.f32 %v675, %v676
        %v678 = vrot.slane %v677, 1
        %v679 = vadd.f32 %v677, %v678
        %v680 = vsel %vm519, %v629, 0.0
        %v681 = vadd.f32 %v621, %v680
        %v682 = vrot.slane %v681, 4
        %v683 = vadd.f32 %v681, %v682
        %v684 = vrot.slane %v683, 2
        %v685 = vadd.f32 %v683, %v684
        %v686 = vrot.slane %v685, 1
        %v687 = vadd.f32 %v685, %v686
        %v688 = vsel %vm519, %v631, 0.0
        %v689 = vadd.f32 %v623, %v688
        %v690 = vrot.slane %v689, 4
        %v691 = vadd.f32 %v689, %v690
        %v692 = vrot.slane %v691, 2
        %v693 = vadd.f32 %v691, %v692
        %v694 = vrot.slane %v693, 1
        %v695 = vadd.f32 %v693, %v694
        %v696 = vrcp.pop %v639
        %v697 = vmul.f32 %v639, %v696
        %v698 = vsub.f32 1.0, %v697
        %v699 = vmul.f32 %v696, %v698
        %v700 = vadd.f32 %v696, %v699
        %vm701 = vweird.f32 %v639
        %vm702 = vweird.f32 %v696
        %vm703 = vmor %vm701, %vm702
        %v704 = vsel %vm703, %v696, %v700
        %v705 = vand.u32 2147483647, %v639
        %vm706 = vcmp.eq.f32.partialorder %v705, 8.507059e+37
        %v707 = vand.u32 %v639, 2147483648
        %v708 = vor.u32 1.1754944e-38, %v707
        %v709 = vsel %vm706, %v708, %v704
        %v710 = vmul.f32 1.0, %v709
        %v711 = vrcp.pop %v647
        %v712 = vmul.f32 %v647, %v711
        %v713 = vsub.f32 1.0, %v712
        %v714 = vmul.f32 %v711, %v713
        %v715 = vadd.f32 %v711, %v714
        %vm716 = vweird.f32 %v647
        %vm717 = vweird.f32 %v711
        %vm718 = vmor %vm716, %vm717
        %v719 = vsel %vm718, %v711, %v715
        %v720 = vand.u32 2147483647, %v647
        %vm721 = vcmp.eq.f32.partialorder %v720, 8.507059e+37
        %v722 = vand.u32 %v647, 2147483648
        %v723 = vor.u32 1.1754944e-38, %v722
        %v724 = vsel %vm721, %v723, %v719
        %v725 = vmul.f32 1.0, %v724
        %v726 = vrcp.pop %v655
        %v727 = vmul.f32 %v655, %v726
        %v728 = vsub.f32 1.0, %v727
        %v729 = vmul.f32 %v726, %v728
        %v730 = vadd.f32 %v726, %v729
        %vm731 = vweird.f32 %v655
        %vm732 = vweird.f32 %v726
        %vm733 = vmor %vm731, %vm732
        %v734 = vsel %vm733, %v726, %v730
        %v735 = vand.u32 2147483647, %v655
        %vm736 = vcmp.eq.f32.partialorder %v735, 8.507059e+37
        %v737 = vand.u32 %v655, 2147483648
        %v738 = vor.u32 1.1754944e-38, %v737
        %v739 = vsel %vm736, %v738, %v734
        %v740 = vmul.f32 1.0, %v739
        %v741 = vrcp.pop %v663
        %v742 = vmul.f32 %v663, %v741
        %v743 = vsub.f32 1.0, %v742
        %v744 = vmul.f32 %v741, %v743
        %v745 = vadd.f32 %v741, %v744
        %vm746 = vweird.f32 %v663
        %vm747 = vweird.f32 %v741
        %vm748 = vmor %vm746, %vm747
        %v749 = vsel %vm748, %v741, %v745
        %v750 = vand.u32 2147483647, %v663
        %vm751 = vcmp.eq.f32.partialorder %v750, 8.507059e+37
        %v752 = vand.u32 %v663, 2147483648
        %v753 = vor.u32 1.1754944e-38, %v752
        %v754 = vsel %vm751, %v753, %v749
        %v755 = vmul.f32 1.0, %v754
        %v756 = vrcp.pop %v671
        %v757 = vmul.f32 %v671, %v756
        %v758 = vsub.f32 1.0, %v757
        %v759 = vmul.f32 %v756, %v758
        %v760 = vadd.f32 %v756, %v759
        %vm761 = vweird.f32 %v671
        %vm762 = vweird.f32 %v756
        %vm763 = vmor %vm761, %vm762
        %v764 = vsel %vm763, %v756, %v760
        %v765 = vand.u32 2147483647, %v671
        %vm766 = vcmp.eq.f32.partialorder %v765, 8.507059e+37
        %v767 = vand.u32 %v671, 2147483648
        %v768 = vor.u32 1.1754944e-38, %v767
        %v769 = vsel %vm766, %v768, %v764
        %v770 = vmul.f32 1.0, %v769
        %v771 = vrcp.pop %v679
        %v772 = vmul.f32 %v679, %v771
        %v773 = vsub.f32 1.0, %v772
        %v774 = vmul.f32 %v771, %v773
        %v775 = vadd.f32 %v771, %v774
        %vm776 = vweird.f32 %v679
        %vm777 = vweird.f32 %v771
        %vm778 = vmor %vm776, %vm777
        %v779 = vsel %vm778, %v771, %v775
        %v780 = vand.u32 2147483647, %v679
        %vm781 = vcmp.eq.f32.partialorder %v780, 8.507059e+37
        %v782 = vand.u32 %v679, 2147483648
        %v783 = vor.u32 1.1754944e-38, %v782
        %v784 = vsel %vm781, %v783, %v779
        %v785 = vmul.f32 1.0, %v784
        %v786 = vrcp.pop %v687
        %v787 = vmul.f32 %v687, %v786
        %v788 = vsub.f32 1.0, %v787
        %v789 = vmul.f32 %v786, %v788
        %v790 = vadd.f32 %v786, %v789
        %vm791 = vweird.f32 %v687
        %vm792 = vweird.f32 %v786
        %vm793 = vmor %vm791, %vm792
        %v794 = vsel %vm793, %v786, %v790
        %v795 = vand.u32 2147483647, %v687
        %vm796 = vcmp.eq.f32.partialorder %v795, 8.507059e+37
        %v797 = vand.u32 %v687, 2147483648
        %v798 = vor.u32 1.1754944e-38, %v797
        %v799 = vsel %vm796, %v798, %v794
        %v800 = vmul.f32 1.0, %v799
        %v801 = vrcp.pop %v695
        %v802 = vmul.f32 %v695, %v801
        %v803 = vsub.f32 1.0, %v802
        %v804 = vmul.f32 %v801, %v803
        %v805 = vadd.f32 %v801, %v804
        %vm806 = vweird.f32 %v695
        %vm807 = vweird.f32 %v801
        %vm808 = vmor %vm806, %vm807
        %v809 = vsel %vm808, %v801, %v805
        %v810 = vand.u32 2147483647, %v695
        %vm811 = vcmp.eq.f32.partialorder %v810, 8.507059e+37
        %v812 = vand.u32 %v695, 2147483648
        %v813 = vor.u32 1.1754944e-38, %v812
        %v814 = vsel %vm811, %v813, %v809
        %v815 = vmul.f32 1.0, %v814
        %v816 = vlog2.pop %v639
        %v817 = vmul.f32 %v816, 0.6931472
        %v818 = vlog2.pop %v647
        %v819 = vmul.f32 %v818, 0.6931472
        %v820 = vlog2.pop %v655
        %v821 = vmul.f32 %v820, 0.6931472
        %v822 = vlog2.pop %v663
        %v823 = vmul.f32 %v822, 0.6931472
        %v824 = vlog2.pop %v671
        %v825 = vmul.f32 %v824, 0.6931472
        %v826 = vlog2.pop %v679
        %v827 = vmul.f32 %v826, 0.6931472
        %v828 = vlog2.pop %v687
        %v829 = vmul.f32 %v828, 0.6931472
        %v830 = vlog2.pop %v695
        %v831 = vmul.f32 %v830, 0.6931472
        %v832 = vlaneseq
        %v833 = vshrl.u32 %v832, 7
        %v834 = vadd.s32 %v833, 8
        %v835 = vrot.slane %v502, 1
        %v836 = vrot.slane %v502, 2
        %v837 = vrot.slane %v502, 3
        %v838 = vsel %vm519, %v502, %v835
        %vm839 = vcmask 1042434
        %v840 = vsel %vm839, %v836, %v837
        %vm841 = vcmask 1041408
        %v842 = vsel %vm841, %v838, %v840
        %vm843 = vcmask 1041409
        %v844 = vsel %vm843, %v502, %v835
        %vm845 = vcmask 1043459
        %v846 = vsel %vm845, %v836, %v837
        %vm847 = vcmask 1042433
        %v848 = vsel %vm847, %v844, %v846
        %v849 = vrot.slane %v848, 1
        %v850 = vperm.slane %v842, 0
        %v851 = vperm.slane %v842, 1
        %v852 = vperm.slane %v842, 2
        %v853 = vperm.slane %v842, 3
        %v854 = vperm.slane %v849, 0
        %v855 = vperm.slane %v849, 1
        %v856 = vperm.slane %v849, 2
        %v857 = vperm.slane %v849, 3
        %vm858 = vcmp.eq.s32.totalorder %v833, %v850
        %vm859 = vcmp.eq.s32.totalorder %v833, %v851
        %vm860 = vcmp.eq.s32.totalorder %v833, %v852
        %vm861 = vcmp.eq.s32.totalorder %v833, %v853
        %vm862 = vcmp.eq.s32.totalorder %v834, %v850
        %vm863 = vcmp.eq.s32.totalorder %v834, %v851
        %vm864 = vcmp.eq.s32.totalorder %v834, %v852
        %vm865 = vcmp.eq.s32.totalorder %v834, %v853
        %vm866 = vcmp.eq.s32.totalorder %v833, %v854
        %vm867 = vcmp.eq.s32.totalorder %v833, %v855
        %vm868 = vcmp.eq.s32.totalorder %v833, %v856
        %vm869 = vcmp.eq.s32.totalorder %v833, %v857
        %vm870 = vcmp.eq.s32.totalorder %v834, %v854
        %vm871 = vcmp.eq.s32.totalorder %v834, %v855
        %vm872 = vcmp.eq.s32.totalorder %v834, %v856
        %vm873 = vcmp.eq.s32.totalorder %v834, %v857
        %v874 = vsel %vm858, 1, 0
        %v875 = vsel %vm859, 1, 0
        %v876 = vsel %vm860, 1, 0
        %v877 = vsel %vm861, 1, 0
        %v878 = vsel %vm862, 1, 0
        %v879 = vsel %vm863, 1, 0
        %v880 = vsel %vm864, 1, 0
        %v881 = vsel %vm865, 1, 0
        %v882 = vsel %vm866, 1, 0
        %v883 = vsel %vm867, 1, 0
        %v884 = vsel %vm868, 1, 0
        %v885 = vsel %vm869, 1, 0
        %v886 = vsel %vm870, 1, 0
        %v887 = vsel %vm871, 1, 0
        %v888 = vsel %vm872, 1, 0
        %v889 = vsel %vm873, 1, 0
        %v890 = vcvt.s32.f32 %v874
        %v891 = vcvt.s32.f32 %v875
        %v892 = vcvt.s32.f32 %v876
        %v893 = vcvt.s32.f32 %v877
        %v894 = vcvt.s32.f32 %v878
        %v895 = vcvt.s32.f32 %v879
        %v896 = vcvt.s32.f32 %v880
        %v897 = vcvt.s32.f32 %v881
        %v898 = vcvt.s32.f32 %v882
        %v899 = vcvt.s32.f32 %v883
        %v900 = vcvt.s32.f32 %v884
        %v901 = vcvt.s32.f32 %v885
        %v902 = vcvt.s32.f32 %v886
        %v903 = vcvt.s32.f32 %v887
        %v904 = vcvt.s32.f32 %v888
        %v905 = vcvt.s32.f32 %v889
        %v906 = vmul.f32 %v584, %v890
        %v907 = vmul.f32 %v585, %v891
        %v908 = vmul.f32 %v586, %v892
        %v909 = vmul.f32 %v587, %v893
        %v910 = vmul.f32 %v588, %v894
        %v911 = vmul.f32 %v589, %v895
        %v912 = vmul.f32 %v590, %v896
        %v913 = vmul.f32 %v591, %v897
        %v914 = vmul.f32 %v592, %v898
        %v915 = vmul.f32 %v593, %v899
        %v916 = vmul.f32 %v594, %v900
        %v917 = vmul.f32 %v595, %v901
        %v918 = vmul.f32 %v596, %v902
        %v919 = vmul.f32 %v597, %v903
        %v920 = vmul.f32 %v598, %v904
        %v921 = vmul.f32 %v599, %v905
        %v922 = vsel %vm519, %v910, 0.0
        %v923 = vadd.f32 %v906, %v922
        %v924 = vrot.slane %v923, 4
        %v925 = vadd.f32 %v923, %v924
        %v926 = vrot.slane %v925, 2
        %v927 = vadd.f32 %v925, %v926
        %v928 = vrot.slane %v927, 1
        %v929 = vadd.f32 %v927, %v928
        %v930 = vsel %vm519, %v911, 0.0
        %v931 = vadd.f32 %v907, %v930
        %v932 = vrot.slane %v931, 4
        %v933 = vadd.f32 %v931, %v932
        %v934 = vrot.slane %v933, 2
        %v935 = vadd.f32 %v933, %v934
        %v936 = vrot.slane %v935, 1
        %v937 = vadd.f32 %v935, %v936
        %v938 = vsel %vm519, %v912, 0.0
        %v939 = vadd.f32 %v908, %v938
        %v940 = vrot.slane %v939, 4
        %v941 = vadd.f32 %v939, %v940
        %v942 = vrot.slane %v941, 2
        %v943 = vadd.f32 %v941, %v942
        %v944 = vrot.slane %v943, 1
        %v945 = vadd.f32 %v943, %v944
        %v946 = vsel %vm519, %v913, 0.0
        %v947 = vadd.f32 %v909, %v946
        %v948 = vrot.slane %v947, 4
        %v949 = vadd.f32 %v947, %v948
        %v950 = vrot.slane %v949, 2
        %v951 = vadd.f32 %v949, %v950
        %v952 = vrot.slane %v951, 1
        %v953 = vadd.f32 %v951, %v952
        %v954 = vsel %vm519, %v918, 0.0
        %v955 = vadd.f32 %v914, %v954
        %v956 = vrot.slane %v955, 4
        %v957 = vadd.f32 %v955, %v956
        %v958 = vrot.slane %v957, 2
        %v959 = vadd.f32 %v957, %v958
        %v960 = vrot.slane %v959, 1
        %v961 = vadd.f32 %v959, %v960
        %v962 = vsel %vm519, %v919, 0.0
        %v963 = vadd.f32 %v915, %v962
        %v964 = vrot.slane %v963, 4
        %v965 = vadd.f32 %v963, %v964
        %v966 = vrot.slane %v965, 2
        %v967 = vadd.f32 %v965, %v966
        %v968 = vrot.slane %v967, 1
        %v969 = vadd.f32 %v967, %v968
        %v970 = vsel %vm519, %v920, 0.0
        %v971 = vadd.f32 %v916, %v970
        %v972 = vrot.slane %v971, 4
        %v973 = vadd.f32 %v971, %v972
        %v974 = vrot.slane %v973, 2
        %v975 = vadd.f32 %v973, %v974
        %v976 = vrot.slane %v975, 1
        %v977 = vadd.f32 %v975, %v976
        %v978 = vsel %vm519, %v921, 0.0
        %v979 = vadd.f32 %v917, %v978
        %v980 = vrot.slane %v979, 4
        %v981 = vadd.f32 %v979, %v980
        %v982 = vrot.slane %v981, 2
        %v983 = vadd.f32 %v981, %v982
        %v984 = vrot.slane %v983, 1
        %v985 = vadd.f32 %v983, %v984
        %v986 = vmul.f32 %v601, %v890
        %v987 = vmul.f32 %v603, %v891
        %v988 = vmul.f32 %v605, %v892
        %v989 = vmul.f32 %v607, %v893
        %v990 = vmul.f32 %v609, %v894
        %v991 = vmul.f32 %v611, %v895
        %v992 = vmul.f32 %v613, %v896
        %v993 = vmul.f32 %v615, %v897
        %v994 = vmul.f32 %v617, %v898
        %v995 = vmul.f32 %v619, %v899
        %v996 = vmul.f32 %v621, %v900
        %v997 = vmul.f32 %v623, %v901
        %v998 = vmul.f32 %v625, %v902
        %v999 = vmul.f32 %v627, %v903
        %v1000 = vmul.f32 %v629, %v904
        %v1001 = vmul.f32 %v631, %v905
        %v1002 = vsel %vm519, %v990, 0.0
        %v1003 = vadd.f32 %v986, %v1002
        %v1004 = vrot.slane %v1003, 4
        %v1005 = vadd.f32 %v1003, %v1004
        %v1006 = vrot.slane %v1005, 2
        %v1007 = vadd.f32 %v1005, %v1006
        %v1008 = vrot.slane %v1007, 1
        %v1009 = vadd.f32 %v1007, %v1008
        %v1010 = vsel %vm519, %v991, 0.0
        %v1011 = vadd.f32 %v987, %v1010
        %v1012 = vrot.slane %v1011, 4
        %v1013 = vadd.f32 %v1011, %v1012
        %v1014 = vrot.slane %v1013, 2
        %v1015 = vadd.f32 %v1013, %v1014
        %v1016 = vrot.slane %v1015, 1
        %v1017 = vadd.f32 %v1015, %v1016
        %v1018 = vsel %vm519, %v992, 0.0
        %v1019 = vadd.f32 %v988, %v1018
        %v1020 = vrot.slane %v1019, 4
        %v1021 = vadd.f32 %v1019, %v1020
        %v1022 = vrot.slane %v1021, 2
        %v1023 = vadd.f32 %v1021, %v1022
        %v1024 = vrot.slane %v1023, 1
        %v1025 = vadd.f32 %v1023, %v1024
        %v1026 = vsel %vm519, %v993, 0.0
        %v1027 = vadd.f32 %v989, %v1026
        %v1028 = vrot.slane %v1027, 4
        %v1029 = vadd.f32 %v1027, %v1028
        %v1030 = vrot.slane %v1029, 2
        %v1031 = vadd.f32 %v1029, %v1030
        %v1032 = vrot.slane %v1031, 1
        %v1033 = vadd.f32 %v1031, %v1032
        %v1034 = vsel %vm519, %v998, 0.0
        %v1035 = vadd.f32 %v994, %v1034
        %v1036 = vrot.slane %v1035, 4
        %v1037 = vadd.f32 %v1035, %v1036
        %v1038 = vrot.slane %v1037, 2
        %v1039 = vadd.f32 %v1037, %v1038
        %v1040 = vrot.slane %v1039, 1
        %v1041 = vadd.f32 %v1039, %v1040
        %v1042 = vsel %vm519, %v999, 0.0
        %v1043 = vadd.f32 %v995, %v1042
        %v1044 = vrot.slane %v1043, 4
        %v1045 = vadd.f32 %v1043, %v1044
        %v1046 = vrot.slane %v1045, 2
        %v1047 = vadd.f32 %v1045, %v1046
        %v1048 = vrot.slane %v1047, 1
        %v1049 = vadd.f32 %v1047, %v1048
        %v1050 = vsel %vm519, %v1000, 0.0
        %v1051 = vadd.f32 %v996, %v1050
        %v1052 = vrot.slane %v1051, 4
        %v1053 = vadd.f32 %v1051, %v1052
        %v1054 = vrot.slane %v1053, 2
        %v1055 = vadd.f32 %v1053, %v1054
        %v1056 = vrot.slane %v1055, 1
        %v1057 = vadd.f32 %v1055, %v1056
        %v1058 = vsel %vm519, %v1001, 0.0
        %v1059 = vadd.f32 %v997, %v1058
        %v1060 = vrot.slane %v1059, 4
        %v1061 = vadd.f32 %v1059, %v1060
        %v1062 = vrot.slane %v1061, 2
        %v1063 = vadd.f32 %v1061, %v1062
        %v1064 = vrot.slane %v1063, 1
        %v1065 = vadd.f32 %v1063, %v1064
        %v1066 = vmul.f32 %v1009, %v710
        %v1067 = vmul.f32 %v1017, %v725
        %v1068 = vmul.f32 %v1025, %v740
        %v1069 = vmul.f32 %v1033, %v755
        %v1070 = vmul.f32 %v1041, %v770
        %v1071 = vmul.f32 %v1049, %v785
        %v1072 = vmul.f32 %v1057, %v800
        %v1073 = vmul.f32 %v1065, %v815
        %v1074 = vsub.f32 %v929, %v817
        %v1075 = vsub.f32 %v937, %v819
        %v1076 = vsub.f32 %v945, %v821
        %v1077 = vsub.f32 %v953, %v823
        %v1078 = vsub.f32 %v961, %v825
        %v1079 = vsub.f32 %v969, %v827
        %v1080 = vsub.f32 %v977, %v829
        %v1081 = vsub.f32 %v985, %v831
        %vm1082 = vcmp.eq.s32.totalorder %v502, 0
        %s1083 = sld [smem:[#allocation5]]
        %v1084 = vstv %s1083
        %v1085 = vsel %vm1082, %v1084, 0.0
        %vm1086 = vcmp.eq.s32.totalorder %v502, 1
        %s1087 = sld [smem:[#allocation5 + $0x1]]
        %v1088 = vstv %s1087
        %v1089 = vsel %vm1086, %v1088, %v1085
        %vm1090 = vcmp.eq.s32.totalorder %v502, 2
        %s1091 = sld [smem:[#allocation5 + $0x2]]
        %v1092 = vstv %s1091
        %v1093 = vsel %vm1090, %v1092, %v1089
        %vm1094 = vcmp.eq.s32.totalorder %v502, 3
        %s1095 = sld [smem:[#allocation5 + $0x3]]
        %v1096 = vstv %s1095
        %v1097 = vsel %vm1094, %v1096, %v1093
        %vm1098 = vcmp.eq.s32.totalorder %v502, 4
        %s1099 = sld [smem:[#allocation5 + $0x4]]
        %v1100 = vstv %s1099
        %v1101 = vsel %vm1098, %v1100, %v1097
        %vm1102 = vcmp.eq.s32.totalorder %v502, 5
        %s1103 = sld [smem:[#allocation5 + $0x5]]
        %v1104 = vstv %s1103
        %v1105 = vsel %vm1102, %v1104, %v1101
        %vm1106 = vcmp.eq.s32.totalorder %v502, 6
        %s1107 = sld [smem:[#allocation5 + $0x6]]
        %v1108 = vstv %s1107
        %v1109 = vsel %vm1106, %v1108, %v1105
        %vm1110 = vcmp.eq.s32.totalorder %v502, 7
        %s1111 = sld [smem:[#allocation5 + $0x7]]
        %v1112 = vstv %s1111
        %v1113 = vsel %vm1110, %v1112, %v1109
        %vm1114 = vcmp.eq.s32.totalorder %v502, 8
        %s1115 = sld [smem:[#allocation5 + $0x8]]
        %v1116 = vstv %s1115
        %v1117 = vsel %vm1114, %v1116, %v1113
        %v1118 = vsub.f32 1.0, %v1066
        %v1119 = vsub.f32 1.0, %v1067
        %v1120 = vsub.f32 1.0, %v1068
        %v1121 = vsub.f32 1.0, %v1069
        %v1122 = vsub.f32 1.0, %v1070
        %v1123 = vsub.f32 1.0, %v1071
        %v1124 = vsub.f32 1.0, %v1072
        %v1125 = vsub.f32 1.0, %v1073
        %v1126 = vsub.f32 0.0, %v1117
        %v1135 = vrot.slane %v1119, 6
        %v1136 = vrot.slane %v1120, 4
        %v1137 = vrot.slane %v1121, 2
        %v1138 = vrot.slane %v1123, 6
        %v1139 = vrot.slane %v1124, 4
        %v1140 = vrot.slane %v1125, 2
        %v1141 = vsel %vm841, %v1118, %v1135
        %vm1142 = vcmask 1045508
        %v1143 = vsel %vm1142, %v1136, %v1137
        %vm1144 = vcmask 1043456
        %v1145 = vsel %vm1144, %v1141, %v1143
        %v1146 = vsel %vm841, %v1122, %v1138
        %v1147 = vsel %vm1142, %v1139, %v1140
        %v1148 = vsel %vm1144, %v1146, %v1147
        %vm1149 = vcmask 1044484
        %v1150 = vsel %vm1149, %v1145, %v1145
        %vm1151 = vcmask 1046534
        %v1152 = vsel %vm1151, %v1145, %v1150
        %v1153 = vrot.slane %v1148, 7
        %v1154 = vsel %vm843, %v1153, %v1152
        %v1155 = vsel %vm845, %v1153, %v1154
        %vm1156 = vcmask 1045509
        %v1157 = vsel %vm1156, %v1153, %v1155
        %vm1158 = vcmask 1047559
        %v1159 = vsel %vm1158, %v1153, %v1157
        %v1161 = vmul.f32 %v1126, %v1159
        %v1162 = vmul.f32 %v1161, %v1159
        %v1171 = vrot.slane %v1075, 6
        %v1172 = vrot.slane %v1076, 4
        %v1173 = vrot.slane %v1077, 2
        %v1174 = vrot.slane %v1079, 6
        %v1175 = vrot.slane %v1080, 4
        %v1176 = vrot.slane %v1081, 2
        %v1177 = vsel %vm841, %v1074, %v1171
        %v1178 = vsel %vm1142, %v1172, %v1173
        %v1179 = vsel %vm1144, %v1177, %v1178
        %v1180 = vsel %vm841, %v1078, %v1174
        %v1181 = vsel %vm1142, %v1175, %v1176
        %v1182 = vsel %vm1144, %v1180, %v1181
        %v1183 = vsel %vm1149, %v1179, %v1179
        %v1184 = vsel %vm1151, %v1179, %v1183
        %v1185 = vrot.slane %v1182, 7
        %v1186 = vsel %vm843, %v1185, %v1184
        %v1187 = vsel %vm845, %v1185, %v1186
        %v1188 = vsel %vm1156, %v1185, %v1187
        %v1189 = vsel %vm1158, %v1185, %v1188
        %v1191 = vmul.f32 %v1162, %v1189
        %1193 = vst [vmem:[#allocation1] ss:$4 sm:$0xff] %v1191
        %v1194 = vld.sshfl [vmem:[#allocation1] sm:$0xff pattern:$0x73625140]
        %v1195 = vld.sshfl [vmem:[#allocation1 + $0x8] sm:$0xff pattern:$0x73625140]
        %v1196 = vld.sshfl [vmem:[#allocation1 + $0x10] sm:$0xff pattern:$0x73625140]
        %v1197 = vld.sshfl [vmem:[#allocation1 + $0x18] sm:$0xff pattern:$0x73625140]
        %v1202 = vsel %vm841, %v1194, 0.0
        %v1203 = vsel %vm841, %v1195, 0.0
        %v1204 = vadd.f32 %v1202, %v1203
        %v1205 = vsel %vm841, %v1196, 0.0
        %v1206 = vadd.f32 %v1204, %v1205
        %v1207 = vsel %vm841, %v1197, 0.0
        %v1208 = vadd.f32 %v1206, %v1207
        %1209 = vadd.xlane.f32.xlu0 %v1208
        %v1210 = vpop.xlane.xlu0 %1209
        %v1211 = vrot.slane %v1210, 4
        %v1212 = vadd.f32 %v1210, %v1211
        %v1213 = vrot.slane %v1212, 2
        %v1214 = vadd.f32 %v1212, %v1213
        %v1215 = vrot.slane %v1214, 1
        %v1216 = vadd.f32 %v1214, %v1215
        %s1217 = vtos %v1216
        %v1218 = vld [vmem:[%s409] sm:$0xff]
        %v1219 = vld [vmem:[%s409 + $0x8] sm:$0xff]
        %v1220 = vld [vmem:[%s409 + $0x10] sm:$0xff]
        %v1221 = vld [vmem:[%s409 + $0x18] sm:$0xff]
        %v1222 = vld [vmem:[%s423] sm:$0xff]
        %v1223 = vld [vmem:[%s423 + $0x8] sm:$0xff]
        %v1224 = vld [vmem:[%s423 + $0x10] sm:$0xff]
        %v1225 = vld [vmem:[%s423 + $0x18] sm:$0xff]
        %vm1226 = vcmp.lt.s32.totalorder %v833, 2
        %v1227 = vmax.f32 %v1222, 1e-12
        %v1228 = vmax.f32 %v1223, 1e-12
        %v1229 = vmax.f32 %v1224, 1e-12
        %v1230 = vmax.f32 %v1225, 1e-12
        %v1231 = vlog2.pop %v1227
        %v1232 = vmul.f32 %v1231, 0.6931472
        %v1233 = vlog2.pop %v1228
        %v1234 = vmul.f32 %v1233, 0.6931472
        %v1235 = vlog2.pop %v1229
        %v1236 = vmul.f32 %v1235, 0.6931472
        %v1237 = vlog2.pop %v1230
        %v1238 = vmul.f32 %v1237, 0.6931472
        %1243 = vst [vmem:[#allocation1] ss:$2 sm:$0xff] %v1222
        %s1244 = scalar_lea.vmem [#allocation1], 16
        %1245 = vst [vmem:[%s1244] ss:$2 sm:$0xff] %v1223
        %v1246 = vld.sshfl [vmem:[#allocation1] sm:$0xff pattern:$0x75316420]
        %v1247 = vld.sshfl [vmem:[#allocation1 + $0x8] sm:$0xff pattern:$0x75316420]
        %v1248 = vld.sshfl [vmem:[#allocation1 + $0x10] sm:$0xff pattern:$0x75316420]
        %v1249 = vld.sshfl [vmem:[#allocation1 + $0x18] sm:$0xff pattern:$0x75316420]
        %s1250 = scalar_lea.vmem [#allocation1], 32
        %1251 = vst [vmem:[%s1250] ss:$2 sm:$0xff] %v1224
        %s1252 = scalar_lea.vmem [#allocation1], 48
        %1253 = vst [vmem:[%s1252] ss:$2 sm:$0xff] %v1225
        %v1254 = vld.sshfl [vmem:[#allocation1 + $0x20] sm:$0xff pattern:$0x75316420]
        %v1255 = vld.sshfl [vmem:[#allocation1 + $0x28] sm:$0xff pattern:$0x75316420]
        %v1256 = vld.sshfl [vmem:[#allocation1 + $0x30] sm:$0xff pattern:$0x75316420]
        %v1257 = vld.sshfl [vmem:[#allocation1 + $0x38] sm:$0xff pattern:$0x75316420]
        %1270 = vst [vmem:[#allocation1] ss:$2 sm:$0xff] %v1232
        %s1271 = scalar_lea.vmem [#allocation1], 16
        %1272 = vst [vmem:[%s1271] ss:$2 sm:$0xff] %v1234
        %v1273 = vld.sshfl [vmem:[#allocation1] sm:$0xff pattern:$0x75316420]
        %v1274 = vld.sshfl [vmem:[#allocation1 + $0x8] sm:$0xff pattern:$0x75316420]
        %v1275 = vld.sshfl [vmem:[#allocation1 + $0x10] sm:$0xff pattern:$0x75316420]
        %v1276 = vld.sshfl [vmem:[#allocation1 + $0x18] sm:$0xff pattern:$0x75316420]
        %s1277 = scalar_lea.vmem [#allocation1], 32
        %1278 = vst [vmem:[%s1277] ss:$2 sm:$0xff] %v1236
        %s1279 = scalar_lea.vmem [#allocation1], 48
        %1280 = vst [vmem:[%s1279] ss:$2 sm:$0xff] %v1238
        %v1281 = vld.sshfl [vmem:[#allocation1 + $0x20] sm:$0xff pattern:$0x75316420]
        %v1282 = vld.sshfl [vmem:[#allocation1 + $0x28] sm:$0xff pattern:$0x75316420]
        %v1283 = vld.sshfl [vmem:[#allocation1 + $0x30] sm:$0xff pattern:$0x75316420]
        %v1284 = vld.sshfl [vmem:[#allocation1 + $0x38] sm:$0xff pattern:$0x75316420]
        %v1293 = vsel %vm1226, %v1246, %v1273
        %v1294 = vsel %vm1226, %v1247, %v1274
        %v1295 = vsel %vm1226, %v1248, %v1275
        %v1296 = vsel %vm1226, %v1249, %v1276
        %v1297 = vsel %vm1226, %v1254, %v1281
        %v1298 = vsel %vm1226, %v1255, %v1282
        %v1299 = vsel %vm1226, %v1256, %v1283
        %v1300 = vsel %vm1226, %v1257, %v1284
        %v1301 = vld [vmem:[%s494] sm:$0xff]
        %v1302 = vld [vmem:[%s494 + $0x8] sm:$0xff]
        %v1303 = vld [vmem:[%s500] sm:$0xff]
        %v1304 = vld [vmem:[%s500 + $0x8] sm:$0xff]
        %1307 = vst [vmem:[#allocation1] ss:$2 sm:$0xff] %v1303
        %s1308 = scalar_lea.vmem [#allocation1], 16
        %1309 = vst [vmem:[%s1308] ss:$2 sm:$0xff] %v1304
        %v1310 = vld.sshfl [vmem:[#allocation1] sm:$0xff pattern:$0x75316420]
        %v1311 = vld.sshfl [vmem:[#allocation1 + $0x8] sm:$0xff pattern:$0x75316420]
        %v1312 = vld.sshfl [vmem:[#allocation1 + $0x10] sm:$0xff pattern:$0x75316420]
        %v1313 = vld.sshfl [vmem:[#allocation1 + $0x18] sm:$0xff pattern:$0x75316420]
        %s1314 = scalar_lea.vmem [#allocation1], 32
        %1315 = vst [vmem:[%s1314] ss:$2 sm:$0xff] %v1303
        %s1316 = scalar_lea.vmem [#allocation1], 48
        %1317 = vst [vmem:[%s1316] ss:$2 sm:$0xff] %v1304
        %v1318 = vld.sshfl [vmem:[#allocation1 + $0x20] sm:$0xff pattern:$0x75316420]
        %v1319 = vld.sshfl [vmem:[#allocation1 + $0x28] sm:$0xff pattern:$0x75316420]
        %v1320 = vld.sshfl [vmem:[#allocation1 + $0x30] sm:$0xff pattern:$0x75316420]
        %v1321 = vld.sshfl [vmem:[#allocation1 + $0x38] sm:$0xff pattern:$0x75316420]
        %v1330 = vsub.f32 %v1293, %v1310
        %v1331 = vsub.f32 %v1294, %v1311
        %v1332 = vsub.f32 %v1295, %v1312
        %v1333 = vsub.f32 %v1296, %v1313
        %v1334 = vsub.f32 %v1297, %v1318
        %v1335 = vsub.f32 %v1298, %v1319
        %v1336 = vsub.f32 %v1299, %v1320
        %v1337 = vsub.f32 %v1300, %v1321
        %v1346 = vrot.slane %v1331, 4
        %v1347 = vrot.slane %v1333, 4
        %v1348 = vrot.slane %v1335, 4
        %v1349 = vrot.slane %v1337, 4
        %v1350 = vsel %vm1144, %v1330, %v1346
        %v1351 = vsel %vm1144, %v1332, %v1347
        %v1352 = vsel %vm1144, %v1334, %v1348
        %v1353 = vsel %vm1144, %v1336, %v1349
        %v1358 = vmul.f32 %v1301, %v1350
        %v1359 = vmul.f32 %v1302, %v1351
        %v1360 = vmul.f32 %v1301, %v1352
        %v1361 = vmul.f32 %v1302, %v1353
        %v1362 = vsub.f32 %v1218, %v1358
        %v1363 = vsub.f32 %v1219, %v1359
        %v1364 = vsub.f32 %v1220, %v1360
        %v1365 = vsub.f32 %v1221, %v1361
        %v1366 = vand.u32 2147483647, %v1362
        %v1367 = vand.u32 2147483647, %v1363
        %v1368 = vand.u32 2147483647, %v1364
        %v1369 = vand.u32 2147483647, %v1365
        %vm1370 = vcmp.lt.f32.partialorder %v1366, 1.0
        %vm1371 = vcmp.lt.f32.partialorder %v1367, 1.0
        %vm1372 = vcmp.lt.f32.partialorder %v1368, 1.0
        %vm1373 = vcmp.lt.f32.partialorder %v1369, 1.0
        %v1374 = vmul.f32 %v1362, 0.5
        %v1375 = vmul.f32 %v1363, 0.5
        %v1376 = vmul.f32 %v1364, 0.5
        %v1377 = vmul.f32 %v1365, 0.5
        %v1378 = vmul.f32 %v1374, %v1362
        %v1379 = vmul.f32 %v1375, %v1363
        %v1380 = vmul.f32 %v1376, %v1364
        %v1381 = vmul.f32 %v1377, %v1365
        %v1382 = vsub.f32 %v1366, 0.5
        %v1383 = vsub.f32 %v1367, 0.5
        %v1384 = vsub.f32 %v1368, 0.5
        %v1385 = vsub.f32 %v1369, 0.5
        %v1386 = vsel %vm1370, %v1378, %v1382
        %v1387 = vsel %vm1371, %v1379, %v1383
        %v1388 = vsel %vm1372, %v1380, %v1384
        %v1389 = vsel %vm1373, %v1381, %v1385
        %vm1390 = vcmp.gt.s32.totalorder %v502, 0
        %v1391 = vsel %vm1390, 1, 0
        %v1392 = vcvt.s32.f32 %v1391
        %1397 = vst [vmem:[#allocation1] ss:$2 sm:$0xff] %v1386
        %s1398 = scalar_lea.vmem [#allocation1], 16
        %1399 = vst [vmem:[%s1398] ss:$2 sm:$0xff] %v1387
        %v1400 = vld.sshfl [vmem:[#allocation1] sm:$0xff pattern:$0x75316420]
        %v1401 = vld.sshfl [vmem:[#allocation1 + $0x8] sm:$0xff pattern:$0x75316420]
        %v1402 = vld.sshfl [vmem:[#allocation1 + $0x10] sm:$0xff pattern:$0x75316420]
        %v1403 = vld.sshfl [vmem:[#allocation1 + $0x18] sm:$0xff pattern:$0x75316420]
        %s1404 = scalar_lea.vmem [#allocation1], 32
        %1405 = vst [vmem:[%s1404] ss:$2 sm:$0xff] %v1388
        %s1406 = scalar_lea.vmem [#allocation1], 48
        %1407 = vst [vmem:[%s1406] ss:$2 sm:$0xff] %v1389
        %v1408 = vld.sshfl [vmem:[#allocation1 + $0x20] sm:$0xff pattern:$0x75316420]
        %v1409 = vld.sshfl [vmem:[#allocation1 + $0x28] sm:$0xff pattern:$0x75316420]
        %v1410 = vld.sshfl [vmem:[#allocation1 + $0x30] sm:$0xff pattern:$0x75316420]
        %v1411 = vld.sshfl [vmem:[#allocation1 + $0x38] sm:$0xff pattern:$0x75316420]
        %v1420 = vsel %vm1144, %v1400, 0.0
        %v1421 = vrot.slane %v1420, 4
        %v1422 = vadd.f32 %v1420, %v1421
        %v1423 = vrot.slane %v1422, 2
        %v1424 = vadd.f32 %v1422, %v1423
        %v1425 = vrot.slane %v1424, 1
        %v1426 = vadd.f32 %v1424, %v1425
        %v1427 = vsel %vm1144, %v1401, 0.0
        %v1428 = vrot.slane %v1427, 4
        %v1429 = vadd.f32 %v1427, %v1428
        %v1430 = vrot.slane %v1429, 2
        %v1431 = vadd.f32 %v1429, %v1430
        %v1432 = vrot.slane %v1431, 1
        %v1433 = vadd.f32 %v1431, %v1432
        %v1434 = vsel %vm1144, %v1402, 0.0
        %v1435 = vrot.slane %v1434, 4
        %v1436 = vadd.f32 %v1434, %v1435
        %v1437 = vrot.slane %v1436, 2
        %v1438 = vadd.f32 %v1436, %v1437
        %v1439 = vrot.slane %v1438, 1
        %v1440 = vadd.f32 %v1438, %v1439
        %v1441 = vsel %vm1144, %v1403, 0.0
        %v1442 = vrot.slane %v1441, 4
        %v1443 = vadd.f32 %v1441, %v1442
        %v1444 = vrot.slane %v1443, 2
        %v1445 = vadd.f32 %v1443, %v1444
        %v1446 = vrot.slane %v1445, 1
        %v1447 = vadd.f32 %v1445, %v1446
        %v1448 = vsel %vm1144, %v1408, 0.0
        %v1449 = vrot.slane %v1448, 4
        %v1450 = vadd.f32 %v1448, %v1449
        %v1451 = vrot.slane %v1450, 2
        %v1452 = vadd.f32 %v1450, %v1451
        %v1453 = vrot.slane %v1452, 1
        %v1454 = vadd.f32 %v1452, %v1453
        %v1455 = vsel %vm1144, %v1409, 0.0
        %v1456 = vrot.slane %v1455, 4
        %v1457 = vadd.f32 %v1455, %v1456
        %v1458 = vrot.slane %v1457, 2
        %v1459 = vadd.f32 %v1457, %v1458
        %v1460 = vrot.slane %v1459, 1
        %v1461 = vadd.f32 %v1459, %v1460
        %v1462 = vsel %vm1144, %v1410, 0.0
        %v1463 = vrot.slane %v1462, 4
        %v1464 = vadd.f32 %v1462, %v1463
        %v1465 = vrot.slane %v1464, 2
        %v1466 = vadd.f32 %v1464, %v1465
        %v1467 = vrot.slane %v1466, 1
        %v1468 = vadd.f32 %v1466, %v1467
        %v1469 = vsel %vm1144, %v1411, 0.0
        %v1470 = vrot.slane %v1469, 4
        %v1471 = vadd.f32 %v1469, %v1470
        %v1472 = vrot.slane %v1471, 2
        %v1473 = vadd.f32 %v1471, %v1472
        %v1474 = vrot.slane %v1473, 1
        %v1475 = vadd.f32 %v1473, %v1474
        %1477 = vst [vmem:[#allocation1] ss:$4 sm:$0xff] %v1392
        %v1478 = vld.sshfl [vmem:[#allocation1] sm:$0xff pattern:$0x73625140]
        %v1479 = vld.sshfl [vmem:[#allocation1 + $0x8] sm:$0xff pattern:$0x73625140]
        %v1480 = vld.sshfl [vmem:[#allocation1 + $0x10] sm:$0xff pattern:$0x73625140]
        %v1481 = vld.sshfl [vmem:[#allocation1 + $0x18] sm:$0xff pattern:$0x73625140]
        %v1482 = vrot.slane %v1478, 1
        %v1483 = vrot.slane %v1479, 1
        %v1484 = vrot.slane %v1480, 1
        %v1485 = vrot.slane %v1481, 1
        %v1494 = vmul.f32 %v1426, %v1478
        %v1495 = vmul.f32 %v1433, %v1479
        %v1496 = vmul.f32 %v1440, %v1480
        %v1497 = vmul.f32 %v1447, %v1481
        %v1498 = vmul.f32 %v1454, %v1482
        %v1499 = vmul.f32 %v1461, %v1483
        %v1500 = vmul.f32 %v1468, %v1484
        %v1501 = vmul.f32 %v1475, %v1485
        %v1510 = vrot.slane %v1498, 7
        %v1511 = vsel %vm843, %v1510, %v1494
        %v1512 = vrot.slane %v1499, 7
        %v1513 = vsel %vm843, %v1512, %v1495
        %v1514 = vrot.slane %v1500, 7
        %v1515 = vsel %vm843, %v1514, %v1496
        %v1516 = vrot.slane %v1501, 7
        %v1517 = vsel %vm843, %v1516, %v1497
        %v1522 = vsel %vm841, %v1511, 0.0
        %v1523 = vsel %vm841, %v1513, 0.0
        %v1524 = vadd.f32 %v1522, %v1523
        %v1525 = vsel %vm841, %v1515, 0.0
        %v1526 = vadd.f32 %v1524, %v1525
        %v1527 = vsel %vm841, %v1517, 0.0
        %v1528 = vadd.f32 %v1526, %v1527
        %1529 = vadd.xlane.f32.xlu0 %v1528
        %v1530 = vpop.xlane.xlu0 %1529
        %v1531 = vrot.slane %v1530, 4
        %v1532 = vadd.f32 %v1530, %v1531
        %v1533 = vrot.slane %v1532, 2
        %v1534 = vadd.f32 %v1532, %v1533
        %v1535 = vrot.slane %v1534, 1
        %v1536 = vadd.f32 %v1534, %v1535
        %s1537 = vtos %v1536
        %1538 = vst [vmem:[#allocation1] ss:$4 sm:$0xff] %v1392
        %v1539 = vld.sshfl [vmem:[#allocation1] sm:$0xff pattern:$0x73625140]
        %v1540 = vld.sshfl [vmem:[#allocation1 + $0x8] sm:$0xff pattern:$0x73625140]
        %v1541 = vld.sshfl [vmem:[#allocation1 + $0x10] sm:$0xff pattern:$0x73625140]
        %v1542 = vld.sshfl [vmem:[#allocation1 + $0x18] sm:$0xff pattern:$0x73625140]
        %v1547 = vsel %vm841, %v1539, 0.0
        %v1548 = vsel %vm841, %v1540, 0.0
        %v1549 = vadd.f32 %v1547, %v1548
        %v1550 = vsel %vm841, %v1541, 0.0
        %v1551 = vadd.f32 %v1549, %v1550
        %v1552 = vsel %vm841, %v1542, 0.0
        %v1553 = vadd.f32 %v1551, %v1552
        %1554 = vadd.xlane.f32.xlu0 %v1553
        %v1555 = vpop.xlane.xlu0 %1554
        %v1556 = vrot.slane %v1555, 4
        %v1557 = vadd.f32 %v1555, %v1556
        %v1558 = vrot.slane %v1557, 2
        %v1559 = vadd.f32 %v1557, %v1558
        %v1560 = vrot.slane %v1559, 1
        %v1561 = vadd.f32 %v1559, %v1560
        %s1562 = vtos %v1561
        %vm1563 = vcmp.eq.s32.totalorder %v833, 0
        %vm1564 = vcmp.eq.s32.totalorder %v833, 1
        %vm1565 = vcmp.eq.s32.totalorder %v833, 2
        %v1566 = vstv %s1562
        %v1567 = vsel %vm1565, %v1566, 0.0
        %v1568 = vstv %s1537
        %v1569 = vsel %vm1564, %v1568, %v1567
        %v1570 = vstv %s1217
        %v1571 = vsel %vm1563, %v1570, %v1569
        %1572 = vst [vmem:[%s480] sm:$0xff] %v1571
        %s1573 = sand.u32 %s207, 1
        %s1574 = scalar_lea.sflag [#allocation6], %s1573
        %s1575 = sand.u32 %s207, 1
        %s1576 = smul.addr %s1575, 8
        %s1577 = scalar_lea.vmem [#allocation8], %s1576
        // Predicated region
        $region122: #{tpu_custom_call.1} parent=104 // pred_check
          %p1578 = pneg %p217
        $region123: #{tpu_custom_call.1} parent=104 // pred_check_branch
          %1580 = sbr.rel (%p1578) target = $region125
        $region124: #{tpu_custom_call.1} parent=104 // pred_region
          %1582 = vsyncadd %s1574, 0
          %s1583 = smul.addr %s22, 8
          %s1584 = scalar_lea.hbm %s7, %s1583
          %s1586 = sshll.u32 %s1577, 4
          %s1587 = int_to_ptr.vmem [resolvable:$true] %s1586
          %s1588 = sshll.u32 %s1584, 4
          %s1589 = int_to_ptr.hbm [resolvable:$true] %s1588
          %1591 = dma.vmem_to_hbm [thread:$0]  %s1587, 128, %s1589, %s1574
        $region125: #{tpu_custom_call.1} parent=104 // pred_fallthru
          _
      $region105: #{tpu_custom_call.1} parent=5 // pred_fallthru
        _
      %p1592 = scmp.le.s32.totalorder 2, %s17
      // Predicated region
      $region126: #{tpu_custom_call.1} parent=5 // pred_check
        %p1593 = pneg %p1592
      $region127: #{tpu_custom_call.1} parent=5 // pred_check_branch
        %1595 = sbr.rel (%p1593) target = $region129
      $region128: #{tpu_custom_call.1} parent=5 // pred_region
        %s1596 = ssub.s32 %s17, 2
        // Predicated region
        $region130: #{tpu_custom_call.1} parent=128 // pred_check
          %p1597 = pneg %p223
        $region131: #{tpu_custom_call.1} parent=128 // pred_check_branch
          %1599 = sbr.rel (%p1597) target = $region133
        $region132: #{tpu_custom_call.1} parent=128 // pred_region
          %s1600 = sand.u32 %s208, 1
          %s1601 = scalar_lea.sflag [#allocation6], %s1600
          %s1602 = sand.u32 %s208, 1
          %s1603 = smul.addr %s1602, 8
          %s1604 = scalar_lea.vmem [#allocation8], %s1603
          %1606 = dma.done %s1601, 128
        $region133: #{tpu_custom_call.1} parent=128 // pred_fallthru
          _
      $region129: #{tpu_custom_call.1} parent=5 // pred_fallthru
        _
    $region6: #{tpu_custom_call.1} parent=1 // loop_footer
      %s21 = sadd.s32 1, %s17
    $region7: #{tpu_custom_call.1} parent=1 // loop_footer_branch
      %16 = sbr.rel target = $region3
    $region8: #{tpu_custom_call.1} parent=1 // loop_exit
      _
    %1607 = vsyncpa [#allocation6], 1
    %s1608 = scalar_lea.sflag [#allocation6], 1
    %1609 = vsyncpa %s1608, 1
    %1610 = vsyncpa [#allocation7], 1
    %s1611 = scalar_lea.sflag [#allocation7], 1
    %1612 = vsyncpa %s1611, 1

</llo_original>
